<compile_context>
chip_gen: v6e
topology: v6e:2x2x1
jax: 0.10.0
libtpu: 0.0.40
codegen_flags: <defaults>
</compile_context>

<pallas_src>
import functools

import jax
import jax.numpy as jnp
from jax.experimental import pallas as pl
from jax.experimental.pallas import tpu as pltpu


def _round_up(x, m):
    return ((x + m - 1) // m) * m


def _mlp_kernel(x_ref,
                w1_ref, b1_ref,
                w2_ref, b2_ref,
                w3_ref, b3_ref,
                w4_ref, b4_ref,
                o_ref):
    """Fused 4-layer MLP forward for one batch tile.

    Weights are bf16 and fully VMEM-resident (constant index_map); activations
    are kept in f32 for bias-add/ReLU and cast to bf16 only for the MXU dots.
    """
    x = x_ref[...].astype(jnp.bfloat16)

    # fc1 + ReLU (bf16 operands, f32 accumulate)
    h = jnp.dot(x, w1_ref[...], preferred_element_type=jnp.float32) + b1_ref[...]
    h = jnp.maximum(h, 0.0)

    # fc2 + ReLU
    h = jnp.dot(h.astype(jnp.bfloat16), w2_ref[...],
                preferred_element_type=jnp.float32) + b2_ref[...]
    h = jnp.maximum(h, 0.0)

    # fc3 + ReLU
    h = jnp.dot(h.astype(jnp.bfloat16), w3_ref[...],
                preferred_element_type=jnp.float32) + b3_ref[...]
    h = jnp.maximum(h, 0.0)

    # dropout(p=0.05): identity in eval mode (no scaling, no masking)
    # TODO(synk): add prng-based masking if training-mode dropout is needed.

    # fc4 (no activation), lane-dense (128-padded) output columns
    o_ref[...] = (jnp.dot(h.astype(jnp.bfloat16), w4_ref[...],
                          preferred_element_type=jnp.float32) + b4_ref[...])


@functools.partial(jax.jit, static_argnames=("block_b",))
def net_forward(x, params, block_b=256):
    """Run the fused MLP kernel.

    x:      (B, n_input) float32
    params: dict with w1..w4 (transposed to (in, out)) and b1..b4 as (1, out)
            rows, all float32. Weights are cast to bf16 and w4/b4 are padded
            to a multiple of 128 output columns inside this wrapper.
    """
    B, n_input = x.shape
    n_output = params["w4"].shape[1]

    # Pad batch to a multiple of block_b (ragged-batch handling).
    b_pad = _round_up(max(B, 1), block_b)
    x_p = x if b_pad == B else jnp.pad(x, ((0, b_pad - B), (0, 0)))

    # Pad output dim to a multiple of 128 so writeback stores are lane-dense.
    n_out_pad = _round_up(n_output, 128)
    w4 = params["w4"]
    b4 = params["b4"]
    if n_out_pad != n_output:
        w4 = jnp.pad(w4, ((0, 0), (0, n_out_pad - n_output)))
        b4 = jnp.pad(b4, ((0, 0), (0, n_out_pad - n_output)))

    # bf16 weights for the MXU; biases stay f32 for the VPU adds.
    w1 = params["w1"].astype(jnp.bfloat16)
    w2 = params["w2"].astype(jnp.bfloat16)
    w3 = params["w3"].astype(jnp.bfloat16)
    w4 = w4.astype(jnp.bfloat16)
    b1 = params["b1"].astype(jnp.float32)
    b2 = params["b2"].astype(jnp.float32)
    b3 = params["b3"].astype(jnp.float32)
    b4 = b4.astype(jnp.float32)

    weight_spec = lambda shape: pl.BlockSpec(shape, lambda i: (0, 0))

    flops = 2 * b_pad * (n_input * 128 + 128 * 256 + 256 * 512 + 512 * n_out_pad)
    bytes_accessed = (
        b_pad * n_input * 4                                   # x (f32)
        + 2 * (n_input * 128 + 128 * 256 + 256 * 512 + 512 * n_out_pad)  # bf16 weights
        + 4 * (128 + 256 + 512 + n_out_pad)                   # f32 biases
        + b_pad * n_out_pad * 4                               # output (f32)
    )

    out_padded = pl.pallas_call(
        _mlp_kernel,
        out_shape=jax.ShapeDtypeStruct((b_pad, n_out_pad), jnp.float32),
        grid_spec=pltpu.PrefetchScalarGridSpec(
            num_scalar_prefetch=0,
            grid=(b_pad // block_b,),
            in_specs=[
                pl.BlockSpec((block_b, n_input), lambda i: (i, 0)),   # x tile
                weight_spec(w1.shape), weight_spec(b1.shape),
                weight_spec(w2.shape), weight_spec(b2.shape),
                weight_spec(w3.shape), weight_spec(b3.shape),
                weight_spec(w4.shape), weight_spec(b4.shape),
            ],
            out_specs=pl.BlockSpec((block_b, n_out_pad), lambda i: (i, 0)),
        ),
        compiler_params=pltpu.CompilerParams(
            dimension_semantics=("parallel",),
        ),
        cost_estimate=pl.CostEstimate(
            flops=flops, transcendentals=0, bytes_accessed=bytes_accessed),
    )(x_p, w1, b1, w2, b2, w3, b3, w4, b4)

    return out_padded[:B, :n_output]


def init_params(key, n_input, n_output):
    """Deterministic init mirroring nn.Linear's U(-1/sqrt(fan_in), 1/sqrt(fan_in)).

    Weights are stored transposed, i.e. shape (fan_in, fan_out), so the kernel
    computes x @ W + b directly.
    """
    dims = [(n_input, 128), (128, 256), (256, 512), (512, n_output)]
    params = {}
    for idx, (fan_in, fan_out) in enumerate(dims, start=1):
        key, kw, kb = jax.random.split(key, 3)
        bound = 1.0 / jnp.sqrt(jnp.float32(fan_in))
        params[f"w{idx}"] = jax.random.uniform(
            kw, (fan_in, fan_out), jnp.float32, minval=-bound, maxval=bound)
        params[f"b{idx}"] = jax.random.uniform(
            kb, (1, fan_out), jnp.float32, minval=-bound, maxval=bound)
    return params


def net_forward_ref(x, params):
    """Pure-JAX reference mirroring the kernel numerics (bf16 ops, f32 acc)."""
    def mm(a, w):
        return jnp.dot(a.astype(jnp.bfloat16), w.astype(jnp.bfloat16),
                       preferred_element_type=jnp.float32)
    h = jax.nn.relu(mm(x, params["w1"]) + params["b1"])
    h = jax.nn.relu(mm(h, params["w2"]) + params["b2"])
    h = jax.nn.relu(mm(h, params["w3"]) + params["b3"])
    return mm(h, params["w4"]) + params["b4"]


if __name__ == "__main__":
    key = jax.random.PRNGKey(0)

    B = 8          # batch (padded to block_b inside the wrapper)
    n_input = 32   # small input feature dim
    n_output = 16  # small output dim (padded to 128 lanes inside the wrapper)

    key, kx, kp = jax.random.split(key, 3)
    x = jax.random.normal(kx, (B, n_input), jnp.float32)
    params = init_params(kp, n_input, n_output)

    out = net_forward(x, params)          # default block_b=256
    out = jax.block_until_ready(out)

    ref = net_forward_ref(x, params)
    assert out.shape == (B, n_output)
    assert jnp.allclose(out, ref, atol=2e-2, rtol=2e-2), "mismatch vs reference"

    print("KERNEL_OK")
</pallas_src>

<mosaic_0001>
module attributes {stable_mosaic.version = 11 : i64} {
  func.func @_mlp_kernel(%arg0: i32, %arg1: memref<256x32xf32, #tpu.memory_space<vmem>>, %arg2: memref<32x128xbf16, #tpu.memory_space<vmem>>, %arg3: memref<1x128xf32, #tpu.memory_space<vmem>>, %arg4: memref<128x256xbf16, #tpu.memory_space<vmem>>, %arg5: memref<1x256xf32, #tpu.memory_space<vmem>>, %arg6: memref<256x512xbf16, #tpu.memory_space<vmem>>, %arg7: memref<1x512xf32, #tpu.memory_space<vmem>>, %arg8: memref<512x128xbf16, #tpu.memory_space<vmem>>, %arg9: memref<1x128xf32, #tpu.memory_space<vmem>>, %arg10: memref<256x128xf32, #tpu.memory_space<vmem>>) attributes {dimension_semantics = [#tpu.dimension_semantics<parallel>], iteration_bounds = array<i64: 1>, scalar_prefetch = 0 : i64, scratch_operands = 0 : i64, tpu.core_type = #tpu.core_type<tc>, window_params = [{transform_indices = @transform_0, window_bounds = array<i64: 256, 32>}, {pipeline_mode = #tpu.pipeline_mode<synchronous>, transform_indices = @transform_1, window_bounds = array<i64: 32, 128>}, {pipeline_mode = #tpu.pipeline_mode<synchronous>, transform_indices = @transform_2, window_bounds = array<i64: 1, 128>}, {pipeline_mode = #tpu.pipeline_mode<synchronous>, transform_indices = @transform_3, window_bounds = array<i64: 128, 256>}, {pipeline_mode = #tpu.pipeline_mode<synchronous>, transform_indices = @transform_4, window_bounds = array<i64: 1, 256>}, {pipeline_mode = #tpu.pipeline_mode<synchronous>, transform_indices = @transform_5, window_bounds = array<i64: 256, 512>}, {pipeline_mode = #tpu.pipeline_mode<synchronous>, transform_indices = @transform_6, window_bounds = array<i64: 1, 512>}, {pipeline_mode = #tpu.pipeline_mode<synchronous>, transform_indices = @transform_7, window_bounds = array<i64: 512, 128>}, {pipeline_mode = #tpu.pipeline_mode<synchronous>, transform_indices = @transform_8, window_bounds = array<i64: 1, 128>}, {transform_indices = @transform_9, window_bounds = array<i64: 256, 128>}]} {
    %c0 = arith.constant 0 : index
    %c0_0 = arith.constant 0 : index
    %0 = vector.load %arg1[%c0, %c0_0] : memref<256x32xf32, #tpu.memory_space<vmem>>, vector<256x32xf32>
    %1 = arith.truncf %0 : vector<256x32xf32> to vector<256x32xbf16>
    %c0_1 = arith.constant 0 : index
    %c0_2 = arith.constant 0 : index
    %2 = vector.load %arg2[%c0_1, %c0_2] : memref<32x128xbf16, #tpu.memory_space<vmem>>, vector<32x128xbf16>
    %cst = arith.constant dense<0.000000e+00> : vector<256x128xf32>
    %3 = tpu.matmul %1, %2, %cst {dimension_numbers = #tpu.dot_dimension_numbers<[1], [0], [0], [1], [0, 0, 1, 1], [], []>} : vector<256x32xbf16>, vector<32x128xbf16>, vector<256x128xf32> -> vector<256x128xf32>
    %c0_3 = arith.constant 0 : index
    %c0_4 = arith.constant 0 : index
    %4 = vector.load %arg3[%c0_3, %c0_4] : memref<1x128xf32, #tpu.memory_space<vmem>>, vector<1x128xf32>
    %5 = vector.broadcast %4 : vector<1x128xf32> to vector<256x128xf32>
    %6 = arith.addf %3, %5 : vector<256x128xf32>
    %cst_5 = arith.constant 0.000000e+00 : f32
    %7 = vector.broadcast %cst_5 : f32 to vector<256x128xf32>
    %8 = arith.maximumf %6, %7 : vector<256x128xf32>
    %9 = arith.truncf %8 : vector<256x128xf32> to vector<256x128xbf16>
    %c0_6 = arith.constant 0 : index
    %c0_7 = arith.constant 0 : index
    %10 = vector.load %arg4[%c0_6, %c0_7] : memref<128x256xbf16, #tpu.memory_space<vmem>>, vector<128x256xbf16>
    %cst_8 = arith.constant dense<0.000000e+00> : vector<256x256xf32>
    %11 = tpu.matmul %9, %10, %cst_8 {dimension_numbers = #tpu.dot_dimension_numbers<[1], [0], [0], [1], [0, 0, 1, 1], [], []>} : vector<256x128xbf16>, vector<128x256xbf16>, vector<256x256xf32> -> vector<256x256xf32>
    %c0_9 = arith.constant 0 : index
    %c0_10 = arith.constant 0 : index
    %12 = vector.load %arg5[%c0_9, %c0_10] : memref<1x256xf32, #tpu.memory_space<vmem>>, vector<1x256xf32>
    %13 = vector.broadcast %12 : vector<1x256xf32> to vector<256x256xf32>
    %14 = arith.addf %11, %13 : vector<256x256xf32>
    %cst_11 = arith.constant 0.000000e+00 : f32
    %15 = vector.broadcast %cst_11 : f32 to vector<256x256xf32>
    %16 = arith.maximumf %14, %15 : vector<256x256xf32>
    %17 = arith.truncf %16 : vector<256x256xf32> to vector<256x256xbf16>
    %c0_12 = arith.constant 0 : index
    %c0_13 = arith.constant 0 : index
    %18 = vector.load %arg6[%c0_12, %c0_13] : memref<256x512xbf16, #tpu.memory_space<vmem>>, vector<256x512xbf16>
    %cst_14 = arith.constant dense<0.000000e+00> : vector<256x512xf32>
    %19 = tpu.matmul %17, %18, %cst_14 {dimension_numbers = #tpu.dot_dimension_numbers<[1], [0], [0], [1], [0, 0, 1, 1], [], []>} : vector<256x256xbf16>, vector<256x512xbf16>, vector<256x512xf32> -> vector<256x512xf32>
    %c0_15 = arith.constant 0 : index
    %c0_16 = arith.constant 0 : index
    %20 = vector.load %arg7[%c0_15, %c0_16] : memref<1x512xf32, #tpu.memory_space<vmem>>, vector<1x512xf32>
    %21 = vector.broadcast %20 : vector<1x512xf32> to vector<256x512xf32>
    %22 = arith.addf %19, %21 : vector<256x512xf32>
    %cst_17 = arith.constant 0.000000e+00 : f32
    %23 = vector.broadcast %cst_17 : f32 to vector<256x512xf32>
    %24 = arith.maximumf %22, %23 : vector<256x512xf32>
    %25 = arith.truncf %24 : vector<256x512xf32> to vector<256x512xbf16>
    %c0_18 = arith.constant 0 : index
    %c0_19 = arith.constant 0 : index
    %26 = vector.load %arg8[%c0_18, %c0_19] : memref<512x128xbf16, #tpu.memory_space<vmem>>, vector<512x128xbf16>
    %cst_20 = arith.constant dense<0.000000e+00> : vector<256x128xf32>
    %27 = tpu.matmul %25, %26, %cst_20 {dimension_numbers = #tpu.dot_dimension_numbers<[1], [0], [0], [1], [0, 0, 1, 1], [], []>} : vector<256x512xbf16>, vector<512x128xbf16>, vector<256x128xf32> -> vector<256x128xf32>
    %c0_21 = arith.constant 0 : index
    %c0_22 = arith.constant 0 : index
    %28 = vector.load %arg9[%c0_21, %c0_22] : memref<1x128xf32, #tpu.memory_space<vmem>>, vector<1x128xf32>
    %29 = vector.broadcast %28 : vector<1x128xf32> to vector<256x128xf32>
    %30 = arith.addf %27, %29 : vector<256x128xf32>
    %c0_23 = arith.constant 0 : index
    %c0_24 = arith.constant 0 : index
    %31 = vector.load %arg10[%c0_23, %c0_24] : memref<256x128xf32, #tpu.memory_space<vmem>>, vector<256x128xf32>
    tpu.vector_store %arg10[%c0_23, %c0_24], %30 {strides = array<i32>} : memref<256x128xf32, #tpu.memory_space<vmem>>, vector<256x128xf32>,
    return
  }
  func.func @transform_0(%arg0: i32) -> (i32, i32) {
    %c0_i32 = arith.constant 0 : i32
    %c0_i32_0 = arith.constant 0 : i32
    return %arg0, %c0_i32 : i32, i32
  }
  func.func @transform_1(%arg0: i32) -> (i32, i32) {
    %c0_i32 = arith.constant 0 : i32
    %c0_i32_0 = arith.constant 0 : i32
    %c0_i32_1 = arith.constant 0 : i32
    return %c0_i32, %c0_i32_0 : i32, i32
  }
  func.func @transform_2(%arg0: i32) -> (i32, i32) {
    %c0_i32 = arith.constant 0 : i32
    %c0_i32_0 = arith.constant 0 : i32
    %c0_i32_1 = arith.constant 0 : i32
    return %c0_i32, %c0_i32_0 : i32, i32
  }
  func.func @transform_3(%arg0: i32) -> (i32, i32) {
    %c0_i32 = arith.constant 0 : i32
    %c0_i32_0 = arith.constant 0 : i32
    %c0_i32_1 = arith.constant 0 : i32
    return %c0_i32, %c0_i32_0 : i32, i32
  }
  func.func @transform_4(%arg0: i32) -> (i32, i32) {
    %c0_i32 = arith.constant 0 : i32
    %c0_i32_0 = arith.constant 0 : i32
    %c0_i32_1 = arith.constant 0 : i32
    return %c0_i32, %c0_i32_0 : i32, i32
  }
  func.func @transform_5(%arg0: i32) -> (i32, i32) {
    %c0_i32 = arith.constant 0 : i32
    %c0_i32_0 = arith.constant 0 : i32
    %c0_i32_1 = arith.constant 0 : i32
    return %c0_i32, %c0_i32_0 : i32, i32
  }
  func.func @transform_6(%arg0: i32) -> (i32, i32) {
    %c0_i32 = arith.constant 0 : i32
    %c0_i32_0 = arith.constant 0 : i32
    %c0_i32_1 = arith.constant 0 : i32
    return %c0_i32, %c0_i32_0 : i32, i32
  }
  func.func @transform_7(%arg0: i32) -> (i32, i32) {
    %c0_i32 = arith.constant 0 : i32
    %c0_i32_0 = arith.constant 0 : i32
    %c0_i32_1 = arith.constant 0 : i32
    return %c0_i32, %c0_i32_0 : i32, i32
  }
  func.func @transform_8(%arg0: i32) -> (i32, i32) {
    %c0_i32 = arith.constant 0 : i32
    %c0_i32_0 = arith.constant 0 : i32
    %c0_i32_1 = arith.constant 0 : i32
    return %c0_i32, %c0_i32_0 : i32, i32
  }
  func.func @transform_9(%arg0: i32) -> (i32, i32) {
    %c0_i32 = arith.constant 0 : i32
    %c0_i32_0 = arith.constant 0 : i32
    return %arg0, %c0_i32 : i32, i32
  }
}

</mosaic_0001>

<llo_original>
// kernel: net_forward.1
$region0: #{net_forward.1}
  #allocation0 [shape = 'u32[]', space=smem, size = 0x4, offset = 0x4, fixed_abs, tag = 'smem constant byte address 0x4 - core index']
  #allocation1 [shape = 'u32[144,128]{1,0:T(1,128)}', space=vmem, size = 0x12000, scoped, tag = 'internal scratch']
  %s0 = inlined_call_operand.vmem [shape: f32[256,32], index: 0, kind: input, shape index: {}]
  %s1 = inlined_call_operand.vmem [shape: bf16[32,128], index: 1, kind: input, shape index: {}]
  %s2 = inlined_call_operand.vmem [shape: f32[1,128], index: 2, kind: input, shape index: {}]
  %s3 = inlined_call_operand.vmem [shape: bf16[128,256], index: 3, kind: input, shape index: {}]
  %s4 = inlined_call_operand.vmem [shape: f32[1,256], index: 4, kind: input, shape index: {}]
  %s5 = inlined_call_operand.vmem [shape: bf16[256,512], index: 5, kind: input, shape index: {}]
  %s6 = inlined_call_operand.vmem [shape: f32[1,512], index: 6, kind: input, shape index: {}]
  %s7 = inlined_call_operand.vmem [shape: bf16[512,128], index: 7, kind: input, shape index: {}]
  %s8 = inlined_call_operand.vmem [shape: f32[1,128], index: 8, kind: input, shape index: {}]
  %s9 = inlined_call_operand.vmem [shape: f32[256,128], index: 9, kind: output, shape index: {}]
  %s10 = sld [smem:[#allocation0]]
  $region46: #{net_forward.1} parent=0
    _
  %s12 = ssub.s32 1, %s10
  %s13 = scalar_select 0, %s12, %s10
  // Predicated region
  $region2: #{net_forward.1} parent=0 // pred_check
    _
  $region3: #{net_forward.1} parent=0 // pred_check_branch
    %15 = sbr.rel (0) target = $region5
  $region4: #{net_forward.1} parent=0 // pred_region
    _
  $region5: #{net_forward.1} parent=0 // pred_fallthru
    _
  // Predicated region
  $region6: #{net_forward.1} parent=0 // pred_check
    _
  $region7: #{net_forward.1} parent=0 // pred_check_branch
    %17 = sbr.rel (0) target = $region9
  $region8: #{net_forward.1} parent=0 // pred_region
    _
  $region9: #{net_forward.1} parent=0 // pred_fallthru
    _
  // Predicated region
  $region10: #{net_forward.1} parent=0 // pred_check
    _
  $region11: #{net_forward.1} parent=0 // pred_check_branch
    %19 = sbr.rel (0) target = $region13
  $region12: #{net_forward.1} parent=0 // pred_region
    _
  $region13: #{net_forward.1} parent=0 // pred_fallthru
    _
  // Predicated region
  $region14: #{net_forward.1} parent=0 // pred_check
    _
  $region15: #{net_forward.1} parent=0 // pred_check_branch
    %21 = sbr.rel (0) target = $region17
  $region16: #{net_forward.1} parent=0 // pred_region
    _
  $region17: #{net_forward.1} parent=0 // pred_fallthru
    _
  // Predicated region
  $region18: #{net_forward.1} parent=0 // pred_check
    _
  $region19: #{net_forward.1} parent=0 // pred_check_branch
    %23 = sbr.rel (0) target = $region21
  $region20: #{net_forward.1} parent=0 // pred_region
    _
  $region21: #{net_forward.1} parent=0 // pred_fallthru
    _
  // Predicated region
  $region22: #{net_forward.1} parent=0 // pred_check
    _
  $region23: #{net_forward.1} parent=0 // pred_check_branch
    %25 = sbr.rel (0) target = $region25
  $region24: #{net_forward.1} parent=0 // pred_region
    _
  $region25: #{net_forward.1} parent=0 // pred_fallthru
    _
  // Predicated region
  $region26: #{net_forward.1} parent=0 // pred_check
    _
  $region27: #{net_forward.1} parent=0 // pred_check_branch
    %27 = sbr.rel (0) target = $region29
  $region28: #{net_forward.1} parent=0 // pred_region
    _
  $region29: #{net_forward.1} parent=0 // pred_fallthru
    _
  // Predicated region
  $region30: #{net_forward.1} parent=0 // pred_check
    _
  $region31: #{net_forward.1} parent=0 // pred_check_branch
    %29 = sbr.rel (0) target = $region33
  $region32: #{net_forward.1} parent=0 // pred_region
    _
  $region33: #{net_forward.1} parent=0 // pred_fallthru
    _
  // Predicated region
  $region34: #{net_forward.1} parent=0 // pred_check
    _
  $region35: #{net_forward.1} parent=0 // pred_check_branch
    %31 = sbr.rel (0) target = $region37
  $region36: #{net_forward.1} parent=0 // pred_region
    _
  $region37: #{net_forward.1} parent=0 // pred_fallthru
    _
  %v33 = vld [vmem:[%s0] sm:$0xff]
  %v34 = vld [vmem:[%s0 + $0x8] sm:$0xff]
  %v35 = vld [vmem:[%s0 + $0x10] sm:$0xff]
  %v36 = vld [vmem:[%s0 + $0x18] sm:$0xff]
  %v37 = vld [vmem:[%s0 + $0x20] sm:$0xff]
  %v38 = vld [vmem:[%s0 + $0x28] sm:$0xff]
  %v39 = vld [vmem:[%s0 + $0x30] sm:$0xff]
  %v40 = vld [vmem:[%s0 + $0x38] sm:$0xff]
  %v41 = vld [vmem:[%s0 + $0x40] sm:$0xff]
  %v42 = vld [vmem:[%s0 + $0x48] sm:$0xff]
  %v43 = vld [vmem:[%s0 + $0x50] sm:$0xff]
  %v44 = vld [vmem:[%s0 + $0x58] sm:$0xff]
  %v45 = vld [vmem:[%s0 + $0x60] sm:$0xff]
  %v46 = vld [vmem:[%s0 + $0x68] sm:$0xff]
  %v47 = vld [vmem:[%s0 + $0x70] sm:$0xff]
  %v48 = vld [vmem:[%s0 + $0x78] sm:$0xff]
  %v49 = vld [vmem:[%s0 + $0x80] sm:$0xff]
  %v50 = vld [vmem:[%s0 + $0x88] sm:$0xff]
  %v51 = vld [vmem:[%s0 + $0x90] sm:$0xff]
  %v52 = vld [vmem:[%s0 + $0x98] sm:$0xff]
  %v53 = vld [vmem:[%s0 + $0xa0] sm:$0xff]
  %v54 = vld [vmem:[%s0 + $0xa8] sm:$0xff]
  %v55 = vld [vmem:[%s0 + $0xb0] sm:$0xff]
  %v56 = vld [vmem:[%s0 + $0xb8] sm:$0xff]
  %v57 = vld [vmem:[%s0 + $0xc0] sm:$0xff]
  %v58 = vld [vmem:[%s0 + $0xc8] sm:$0xff]
  %v59 = vld [vmem:[%s0 + $0xd0] sm:$0xff]
  %v60 = vld [vmem:[%s0 + $0xd8] sm:$0xff]
  %v61 = vld [vmem:[%s0 + $0xe0] sm:$0xff]
  %v62 = vld [vmem:[%s0 + $0xe8] sm:$0xff]
  %v63 = vld [vmem:[%s0 + $0xf0] sm:$0xff]
  %v64 = vld [vmem:[%s0 + $0xf8] sm:$0xff]
  %v65 = vpack.c.bf16 %v34, %v33
  %v66 = vpack.c.bf16 %v36, %v35
  %v67 = vpack.c.bf16 %v38, %v37
  %v68 = vpack.c.bf16 %v40, %v39
  %v69 = vpack.c.bf16 %v42, %v41
  %v70 = vpack.c.bf16 %v44, %v43
  %v71 = vpack.c.bf16 %v46, %v45
  %v72 = vpack.c.bf16 %v48, %v47
  %v73 = vpack.c.bf16 %v50, %v49
  %v74 = vpack.c.bf16 %v52, %v51
  %v75 = vpack.c.bf16 %v54, %v53
  %v76 = vpack.c.bf16 %v56, %v55
  %v77 = vpack.c.bf16 %v58, %v57
  %v78 = vpack.c.bf16 %v60, %v59
  %v79 = vpack.c.bf16 %v62, %v61
  %v80 = vpack.c.bf16 %v64, %v63
  %v81 = vld [vmem:[%s1] sm:$0xf]
  %v82 = vld [vmem:[%s1 + $0x4] sm:$0xf]
  %v83 = vld [vmem:[%s1 + $0x8] sm:$0xf]
  %v84 = vld [vmem:[%s1 + $0xc] sm:$0xf]
  %v85 = vld [vmem:[%s2] sm:$0x1]
  %v87 = vlaneseq
  %v88 = vshrl.u32 %v87, 7
  %v89 = vsub.s32 0, %v88
  %v90 = vrot.slane %v85, %v89
  %v96 = vunpack.c.l.b16 %v81
  %v97 = vunpack.c.l.b16 %v82
  %v98 = vunpack.c.l.b16 %v83
  %v99 = vunpack.c.l.b16 %v84
  %v100 = vpack.c.b16 %v97, %v96
  %v101 = vpack.c.b16 %v99, %v98
  %vm104 = vcmask 261120
  %v106 = vsel %vm104, %v65, 0
  %v109 = vsel %vm104, %v66, 0
  %v112 = vsel %vm104, %v67, 0
  %v115 = vsel %vm104, %v68, 0
  %v118 = vsel %vm104, %v69, 0
  %v121 = vsel %vm104, %v70, 0
  %v124 = vsel %vm104, %v71, 0
  %v127 = vsel %vm104, %v72, 0
  %v130 = vsel %vm104, %v73, 0
  %v133 = vsel %vm104, %v74, 0
  %v136 = vsel %vm104, %v75, 0
  %v139 = vsel %vm104, %v76, 0
  %v142 = vsel %vm104, %v77, 0
  %v145 = vsel %vm104, %v78, 0
  %v148 = vsel %vm104, %v79, 0
  %v151 = vsel %vm104, %v80, 0
  %153 = vmatprep.subr.bf16.mxu0 0
  %154 = vmatpush1.bf16.msra.mxu0 0
  %155 = vmatprep.subr.bf16.mxu0 0
  %156 = vmatpush1.bf16.msra.mxu0 0
  %157 = vmatprep.subr.bf16.mxu0 0
  %158 = vmatpush1.bf16.msra.mxu0 0
  %159 = vmatprep.subr.bf16.mxu0 0
  %160 = vmatpush1.bf16.msra.mxu0 0
  %161 = vmatprep.subr.bf16.mxu0 0
  %162 = vmatpush1.bf16.msra.mxu0 0
  %163 = vmatprep.subr.bf16.mxu0 0
  %164 = vmatpush1.bf16.msra.mxu0 0
  %165 = vmatprep.subr.bf16.mxu0 0
  %166 = vmatpush1.bf16.msra.mxu0 %v101
  %167 = vmatprep.subr.bf16.mxu0 0
  %168 = vmatpush1.bf16.msra.mxu0 %v100
  %169 = vmatprep.subr.bf16.mxu0 0
  %170 = vmatpush2.bf16.msra.mxu0 0
  %171 = vmatprep.subr.bf16.mxu0 0
  %172 = vmatpush2.bf16.msra.mxu0 0
  %173 = vmatprep.subr.bf16.mxu0 0
  %174 = vmatpush2.bf16.msra.mxu0 0
  %175 = vmatprep.subr.bf16.mxu0 0
  %176 = vmatpush2.bf16.msra.mxu0 0
  %177 = vmatprep.subr.bf16.mxu0 0
  %178 = vmatpush2.bf16.msra.mxu0 0
  %179 = vmatprep.subr.bf16.mxu0 0
  %180 = vmatpush2.bf16.msra.mxu0 0
  %181 = vmatprep.subr.bf16.mxu0 0
  %182 = vmatpush2.bf16.msra.mxu0 0
  %183 = vmatprep.subr.bf16.mxu0 0
  %184 = vmatpush2.bf16.msra.mxu0 0
  %185 = vmatprep.mubr.bf16.mxu0 0
  %186 = vmatmul.mubr.bf16.gmra.mxu0 %v106
  %v187 = vpop.f32.mrf.mxu0
  %v188 = vadd.f32 %v90, %v187
  %v189 = vpop.f32.mrf.mxu0
  %v190 = vpop.f32.mrf.mxu0
  %v191 = vadd.f32 %v90, %v190
  %v192 = vpop.f32.mrf.mxu0
  %193 = vmatprep.mubr.bf16.mxu0 0
  %194 = vmatmul.mubr.bf16.gmra.mxu0 %v109
  %v195 = vpop.f32.mrf.mxu0
  %v196 = vadd.f32 %v90, %v195
  %v197 = vpop.f32.mrf.mxu0
  %v198 = vpop.f32.mrf.mxu0
  %v199 = vadd.f32 %v90, %v198
  %v200 = vpop.f32.mrf.mxu0
  %201 = vmatprep.mubr.bf16.mxu0 0
  %202 = vmatmul.mubr.bf16.gmra.mxu0 %v112
  %v203 = vpop.f32.mrf.mxu0
  %v204 = vadd.f32 %v90, %v203
  %v205 = vpop.f32.mrf.mxu0
  %v206 = vpop.f32.mrf.mxu0
  %v207 = vadd.f32 %v90, %v206
  %v208 = vpop.f32.mrf.mxu0
  %209 = vmatprep.mubr.bf16.mxu0 0
  %210 = vmatmul.mubr.bf16.gmra.mxu0 %v115
  %v211 = vpop.f32.mrf.mxu0
  %v212 = vadd.f32 %v90, %v211
  %v213 = vpop.f32.mrf.mxu0
  %v214 = vpop.f32.mrf.mxu0
  %v215 = vadd.f32 %v90, %v214
  %v216 = vpop.f32.mrf.mxu0
  %217 = vmatprep.mubr.bf16.mxu0 0
  %218 = vmatmul.mubr.bf16.gmra.mxu0 %v118
  %v219 = vpop.f32.mrf.mxu0
  %v220 = vadd.f32 %v90, %v219
  %v221 = vpop.f32.mrf.mxu0
  %v222 = vpop.f32.mrf.mxu0
  %v223 = vadd.f32 %v90, %v222
  %v224 = vpop.f32.mrf.mxu0
  %225 = vmatprep.mubr.bf16.mxu0 0
  %226 = vmatmul.mubr.bf16.gmra.mxu0 %v121
  %v227 = vpop.f32.mrf.mxu0
  %v228 = vadd.f32 %v90, %v227
  %v229 = vpop.f32.mrf.mxu0
  %v230 = vpop.f32.mrf.mxu0
  %v231 = vadd.f32 %v90, %v230
  %v232 = vpop.f32.mrf.mxu0
  %233 = vmatprep.mubr.bf16.mxu0 0
  %234 = vmatmul.mubr.bf16.gmra.mxu0 %v124
  %v235 = vpop.f32.mrf.mxu0
  %v236 = vadd.f32 %v90, %v235
  %v237 = vpop.f32.mrf.mxu0
  %v238 = vpop.f32.mrf.mxu0
  %v239 = vadd.f32 %v90, %v238
  %v240 = vpop.f32.mrf.mxu0
  %241 = vmatprep.mubr.bf16.mxu0 0
  %242 = vmatmul.mubr.bf16.gmra.mxu0 %v127
  %v243 = vpop.f32.mrf.mxu0
  %v244 = vadd.f32 %v90, %v243
  %v245 = vpop.f32.mrf.mxu0
  %v246 = vpop.f32.mrf.mxu0
  %v247 = vadd.f32 %v90, %v246
  %v248 = vpop.f32.mrf.mxu0
  %249 = vmatprep.mubr.bf16.mxu0 0
  %250 = vmatmul.mubr.bf16.gmra.mxu0 %v130
  %v251 = vpop.f32.mrf.mxu0
  %v252 = vadd.f32 %v90, %v251
  %v253 = vpop.f32.mrf.mxu0
  %v254 = vpop.f32.mrf.mxu0
  %v255 = vadd.f32 %v90, %v254
  %v256 = vpop.f32.mrf.mxu0
  %257 = vmatprep.mubr.bf16.mxu0 0
  %258 = vmatmul.mubr.bf16.gmra.mxu0 %v133
  %v259 = vpop.f32.mrf.mxu0
  %v260 = vadd.f32 %v90, %v259
  %v261 = vpop.f32.mrf.mxu0
  %v262 = vpop.f32.mrf.mxu0
  %v263 = vadd.f32 %v90, %v262
  %v264 = vpop.f32.mrf.mxu0
  %265 = vmatprep.mubr.bf16.mxu0 0
  %266 = vmatmul.mubr.bf16.gmra.mxu0 %v136
  %v267 = vpop.f32.mrf.mxu0
  %v268 = vadd.f32 %v90, %v267
  %v269 = vpop.f32.mrf.mxu0
  %v270 = vpop.f32.mrf.mxu0
  %v271 = vadd.f32 %v90, %v270
  %v272 = vpop.f32.mrf.mxu0
  %273 = vmatprep.mubr.bf16.mxu0 0
  %274 = vmatmul.mubr.bf16.gmra.mxu0 %v139
  %v275 = vpop.f32.mrf.mxu0
  %v276 = vadd.f32 %v90, %v275
  %v277 = vpop.f32.mrf.mxu0
  %v278 = vpop.f32.mrf.mxu0
  %v279 = vadd.f32 %v90, %v278
  %v280 = vpop.f32.mrf.mxu0
  %281 = vmatprep.mubr.bf16.mxu0 0
  %282 = vmatmul.mubr.bf16.gmra.mxu0 %v142
  %v283 = vpop.f32.mrf.mxu0
  %v284 = vadd.f32 %v90, %v283
  %v285 = vpop.f32.mrf.mxu0
  %v286 = vpop.f32.mrf.mxu0
  %v287 = vadd.f32 %v90, %v286
  %v288 = vpop.f32.mrf.mxu0
  %289 = vmatprep.mubr.bf16.mxu0 0
  %290 = vmatmul.mubr.bf16.gmra.mxu0 %v145
  %v291 = vpop.f32.mrf.mxu0
  %v292 = vadd.f32 %v90, %v291
  %v293 = vpop.f32.mrf.mxu0
  %v294 = vpop.f32.mrf.mxu0
  %v295 = vadd.f32 %v90, %v294
  %v296 = vpop.f32.mrf.mxu0
  %297 = vmatprep.mubr.bf16.mxu0 0
  %298 = vmatmul.mubr.bf16.gmra.mxu0 %v148
  %v299 = vpop.f32.mrf.mxu0
  %v300 = vadd.f32 %v90, %v299
  %v301 = vpop.f32.mrf.mxu0
  %v302 = vpop.f32.mrf.mxu0
  %v303 = vadd.f32 %v90, %v302
  %v304 = vpop.f32.mrf.mxu0
  %305 = vmatprep.mubr.bf16.mxu0 0
  %306 = vmatmul.mubr.bf16.gmra.mxu0 %v151
  %v307 = vpop.f32.mrf.mxu0
  %v308 = vadd.f32 %v90, %v307
  %v309 = vpop.f32.mrf.mxu0
  %v310 = vpop.f32.mrf.mxu0
  %v311 = vadd.f32 %v90, %v310
  %v312 = vpop.f32.mrf.mxu0
  %313 = vdwg.mxu0
  %v314 = vmax.f32 %v188, 0.0
  %v315 = vmax.f32 %v191, 0.0
  %v316 = vmax.f32 %v196, 0.0
  %v317 = vmax.f32 %v199, 0.0
  %v318 = vmax.f32 %v204, 0.0
  %v319 = vmax.f32 %v207, 0.0
  %v320 = vmax.f32 %v212, 0.0
  %v321 = vmax.f32 %v215, 0.0
  %v322 = vmax.f32 %v220, 0.0
  %v323 = vmax.f32 %v223, 0.0
  %v324 = vmax.f32 %v228, 0.0
  %v325 = vmax.f32 %v231, 0.0
  %v326 = vmax.f32 %v236, 0.0
  %v327 = vmax.f32 %v239, 0.0
  %v328 = vmax.f32 %v244, 0.0
  %v329 = vmax.f32 %v247, 0.0
  %v330 = vmax.f32 %v252, 0.0
  %v331 = vmax.f32 %v255, 0.0
  %v332 = vmax.f32 %v260, 0.0
  %v333 = vmax.f32 %v263, 0.0
  %v334 = vmax.f32 %v268, 0.0
  %v335 = vmax.f32 %v271, 0.0
  %v336 = vmax.f32 %v276, 0.0
  %v337 = vmax.f32 %v279, 0.0
  %v338 = vmax.f32 %v284, 0.0
  %v339 = vmax.f32 %v287, 0.0
  %v340 = vmax.f32 %v292, 0.0
  %v341 = vmax.f32 %v295, 0.0
  %v342 = vmax.f32 %v300, 0.0
  %v343 = vmax.f32 %v303, 0.0
  %v344 = vmax.f32 %v308, 0.0
  %v345 = vmax.f32 %v311, 0.0
  %v346 = vpack.c.bf16 %v315, %v314
  %v347 = vpack.c.bf16 %v317, %v316
  %v348 = vpack.c.bf16 %v319, %v318
  %v349 = vpack.c.bf16 %v321, %v320
  %v350 = vpack.c.bf16 %v323, %v322
  %v351 = vpack.c.bf16 %v325, %v324
  %v352 = vpack.c.bf16 %v327, %v326
  %v353 = vpack.c.bf16 %v329, %v328
  %v354 = vpack.c.bf16 %v331, %v330
  %v355 = vpack.c.bf16 %v333, %v332
  %v356 = vpack.c.bf16 %v335, %v334
  %v357 = vpack.c.bf16 %v337, %v336
  %v358 = vpack.c.bf16 %v339, %v338
  %v359 = vpack.c.bf16 %v341, %v340
  %v360 = vpack.c.bf16 %v343, %v342
  %v361 = vpack.c.bf16 %v345, %v344
  %v362 = vld [vmem:[%s3] sm:$0xff]
  %v363 = vld [vmem:[%s3 + $0x8] sm:$0xff]
  %v364 = vld [vmem:[%s3 + $0x10] sm:$0xff]
  %v365 = vld [vmem:[%s3 + $0x18] sm:$0xff]
  %v366 = vld [vmem:[%s3 + $0x20] sm:$0xff]
  %v367 = vld [vmem:[%s3 + $0x28] sm:$0xff]
  %v368 = vld [vmem:[%s3 + $0x30] sm:$0xff]
  %v369 = vld [vmem:[%s3 + $0x38] sm:$0xff]
  %v370 = vld [vmem:[%s3 + $0x40] sm:$0xff]
  %v371 = vld [vmem:[%s3 + $0x48] sm:$0xff]
  %v372 = vld [vmem:[%s3 + $0x50] sm:$0xff]
  %v373 = vld [vmem:[%s3 + $0x58] sm:$0xff]
  %v374 = vld [vmem:[%s3 + $0x60] sm:$0xff]
  %v375 = vld [vmem:[%s3 + $0x68] sm:$0xff]
  %v376 = vld [vmem:[%s3 + $0x70] sm:$0xff]
  %v377 = vld [vmem:[%s3 + $0x78] sm:$0xff]
  %v378 = vld [vmem:[%s4] sm:$0x3]
  %v380 = vlaneseq
  %v381 = vshrl.u32 %v380, 7
  %v382 = vsub.s32 0, %v381
  %v383 = vrot.slane %v378, %v382
  %v384 = vlaneseq
  %v385 = vshrl.u32 %v384, 7
  %v386 = vsub.s32 1, %v385
  %v387 = vrot.slane %v378, %v386
  %v406 = vunpack.c.l.b16 %v362
  %v407 = vunpack.c.h.b16 %v362
  %v408 = vunpack.c.l.b16 %v363
  %v409 = vunpack.c.h.b16 %v363
  %v410 = vunpack.c.l.b16 %v364
  %v411 = vunpack.c.h.b16 %v364
  %v412 = vunpack.c.l.b16 %v365
  %v413 = vunpack.c.h.b16 %v365
  %v414 = vunpack.c.l.b16 %v366
  %v415 = vunpack.c.h.b16 %v366
  %v416 = vunpack.c.l.b16 %v367
  %v417 = vunpack.c.h.b16 %v367
  %v418 = vunpack.c.l.b16 %v368
  %v419 = vunpack.c.h.b16 %v368
  %v420 = vunpack.c.l.b16 %v369
  %v421 = vunpack.c.h.b16 %v369
  %v422 = vunpack.c.l.b16 %v370
  %v423 = vunpack.c.h.b16 %v370
  %v424 = vunpack.c.l.b16 %v371
  %v425 = vunpack.c.h.b16 %v371
  %v426 = vunpack.c.l.b16 %v372
  %v427 = vunpack.c.h.b16 %v372
  %v428 = vunpack.c.l.b16 %v373
  %v429 = vunpack.c.h.b16 %v373
  %v430 = vunpack.c.l.b16 %v374
  %v431 = vunpack.c.h.b16 %v374
  %v432 = vunpack.c.l.b16 %v375
  %v433 = vunpack.c.h.b16 %v375
  %v434 = vunpack.c.l.b16 %v376
  %v435 = vunpack.c.h.b16 %v376
  %v436 = vunpack.c.l.b16 %v377
  %v437 = vunpack.c.h.b16 %v377
  %v438 = vpack.c.b16 %v408, %v406
  %v439 = vpack.c.b16 %v409, %v407
  %v440 = vpack.c.b16 %v412, %v410
  %v441 = vpack.c.b16 %v413, %v411
  %v442 = vpack.c.b16 %v416, %v414
  %v443 = vpack.c.b16 %v417, %v415
  %v444 = vpack.c.b16 %v420, %v418
  %v445 = vpack.c.b16 %v421, %v419
  %v446 = vpack.c.b16 %v424, %v422
  %v447 = vpack.c.b16 %v425, %v423
  %v448 = vpack.c.b16 %v428, %v426
  %v449 = vpack.c.b16 %v429, %v427
  %v450 = vpack.c.b16 %v432, %v430
  %v451 = vpack.c.b16 %v433, %v431
  %v452 = vpack.c.b16 %v436, %v434
  %v453 = vpack.c.b16 %v437, %v435
  %470 = vmatprep.subr.bf16.mxu0 %v453
  %471 = vmatpush1.bf16.msra.mxu0 %v452
  %472 = vmatprep.subr.bf16.mxu0 %v451
  %473 = vmatpush1.bf16.msra.mxu0 %v450
  %474 = vmatprep.subr.bf16.mxu0 %v449
  %475 = vmatpush1.bf16.msra.mxu0 %v448
  %476 = vmatprep.subr.bf16.mxu0 %v447
  %477 = vmatpush1.bf16.msra.mxu0 %v446
  %478 = vmatprep.subr.bf16.mxu0 %v445
  %479 = vmatpush1.bf16.msra.mxu0 %v444
  %480 = vmatprep.subr.bf16.mxu0 %v443
  %481 = vmatpush1.bf16.msra.mxu0 %v442
  %482 = vmatprep.subr.bf16.mxu0 %v441
  %483 = vmatpush1.bf16.msra.mxu0 %v440
  %484 = vmatprep.subr.bf16.mxu0 %v439
  %485 = vmatpush1.bf16.msra.mxu0 %v438
  %486 = vmatprep.subr.bf16.mxu0 0
  %487 = vmatpush2.bf16.msra.mxu0 0
  %488 = vmatprep.subr.bf16.mxu0 0
  %489 = vmatpush2.bf16.msra.mxu0 0
  %490 = vmatprep.subr.bf16.mxu0 0
  %491 = vmatpush2.bf16.msra.mxu0 0
  %492 = vmatprep.subr.bf16.mxu0 0
  %493 = vmatpush2.bf16.msra.mxu0 0
  %494 = vmatprep.subr.bf16.mxu0 0
  %495 = vmatpush2.bf16.msra.mxu0 0
  %496 = vmatprep.subr.bf16.mxu0 0
  %497 = vmatpush2.bf16.msra.mxu0 0
  %498 = vmatprep.subr.bf16.mxu0 0
  %499 = vmatpush2.bf16.msra.mxu0 0
  %500 = vmatprep.subr.bf16.mxu0 0
  %501 = vmatpush2.bf16.msra.mxu0 0
  %502 = vmatprep.mubr.bf16.mxu0 0
  %503 = vmatmul.mubr.bf16.gmra.mxu0 %v346
  %v504 = vpop.f32.mrf.mxu0
  %v505 = vadd.f32 %v383, %v504
  %v506 = vpop.f32.mrf.mxu0
  %v507 = vadd.f32 %v387, %v506
  %v508 = vpop.f32.mrf.mxu0
  %v509 = vadd.f32 %v383, %v508
  %v510 = vpop.f32.mrf.mxu0
  %v511 = vadd.f32 %v387, %v510
  %512 = vmatprep.mubr.bf16.mxu0 0
  %513 = vmatmul.mubr.bf16.gmra.mxu0 %v347
  %v514 = vpop.f32.mrf.mxu0
  %v515 = vadd.f32 %v383, %v514
  %v516 = vpop.f32.mrf.mxu0
  %v517 = vadd.f32 %v387, %v516
  %v518 = vpop.f32.mrf.mxu0
  %v519 = vadd.f32 %v383, %v518
  %v520 = vpop.f32.mrf.mxu0
  %v521 = vadd.f32 %v387, %v520
  %522 = vmatprep.mubr.bf16.mxu0 0
  %523 = vmatmul.mubr.bf16.gmra.mxu0 %v348
  %v524 = vpop.f32.mrf.mxu0
  %v525 = vadd.f32 %v383, %v524
  %v526 = vpop.f32.mrf.mxu0
  %v527 = vadd.f32 %v387, %v526
  %v528 = vpop.f32.mrf.mxu0
  %v529 = vadd.f32 %v383, %v528
  %v530 = vpop.f32.mrf.mxu0
  %v531 = vadd.f32 %v387, %v530
  %532 = vmatprep.mubr.bf16.mxu0 0
  %533 = vmatmul.mubr.bf16.gmra.mxu0 %v349
  %v534 = vpop.f32.mrf.mxu0
  %v535 = vadd.f32 %v383, %v534
  %v536 = vpop.f32.mrf.mxu0
  %v537 = vadd.f32 %v387, %v536
  %v538 = vpop.f32.mrf.mxu0
  %v539 = vadd.f32 %v383, %v538
  %v540 = vpop.f32.mrf.mxu0
  %v541 = vadd.f32 %v387, %v540
  %542 = vmatprep.mubr.bf16.mxu0 0
  %543 = vmatmul.mubr.bf16.gmra.mxu0 %v350
  %v544 = vpop.f32.mrf.mxu0
  %v545 = vadd.f32 %v383, %v544
  %v546 = vpop.f32.mrf.mxu0
  %v547 = vadd.f32 %v387, %v546
  %v548 = vpop.f32.mrf.mxu0
  %v549 = vadd.f32 %v383, %v548
  %v550 = vpop.f32.mrf.mxu0
  %v551 = vadd.f32 %v387, %v550
  %552 = vmatprep.mubr.bf16.mxu0 0
  %553 = vmatmul.mubr.bf16.gmra.mxu0 %v351
  %v554 = vpop.f32.mrf.mxu0
  %v555 = vadd.f32 %v383, %v554
  %v556 = vpop.f32.mrf.mxu0
  %v557 = vadd.f32 %v387, %v556
  %v558 = vpop.f32.mrf.mxu0
  %v559 = vadd.f32 %v383, %v558
  %v560 = vpop.f32.mrf.mxu0
  %v561 = vadd.f32 %v387, %v560
  %562 = vmatprep.mubr.bf16.mxu0 0
  %563 = vmatmul.mubr.bf16.gmra.mxu0 %v352
  %v564 = vpop.f32.mrf.mxu0
  %v565 = vadd.f32 %v383, %v564
  %v566 = vpop.f32.mrf.mxu0
  %v567 = vadd.f32 %v387, %v566
  %v568 = vpop.f32.mrf.mxu0
  %v569 = vadd.f32 %v383, %v568
  %v570 = vpop.f32.mrf.mxu0
  %v571 = vadd.f32 %v387, %v570
  %572 = vmatprep.mubr.bf16.mxu0 0
  %573 = vmatmul.mubr.bf16.gmra.mxu0 %v353
  %v574 = vpop.f32.mrf.mxu0
  %v575 = vadd.f32 %v383, %v574
  %v576 = vpop.f32.mrf.mxu0
  %v577 = vadd.f32 %v387, %v576
  %v578 = vpop.f32.mrf.mxu0
  %v579 = vadd.f32 %v383, %v578
  %v580 = vpop.f32.mrf.mxu0
  %v581 = vadd.f32 %v387, %v580
  %582 = vmatprep.mubr.bf16.mxu0 0
  %583 = vmatmul.mubr.bf16.gmra.mxu0 %v354
  %v584 = vpop.f32.mrf.mxu0
  %v585 = vadd.f32 %v383, %v584
  %v586 = vpop.f32.mrf.mxu0
  %v587 = vadd.f32 %v387, %v586
  %v588 = vpop.f32.mrf.mxu0
  %v589 = vadd.f32 %v383, %v588
  %v590 = vpop.f32.mrf.mxu0
  %v591 = vadd.f32 %v387, %v590
  %592 = vmatprep.mubr.bf16.mxu0 0
  %593 = vmatmul.mubr.bf16.gmra.mxu0 %v355
  %v594 = vpop.f32.mrf.mxu0
  %v595 = vadd.f32 %v383, %v594
  %v596 = vpop.f32.mrf.mxu0
  %v597 = vadd.f32 %v387, %v596
  %v598 = vpop.f32.mrf.mxu0
  %v599 = vadd.f32 %v383, %v598
  %v600 = vpop.f32.mrf.mxu0
  %v601 = vadd.f32 %v387, %v600
  %602 = vmatprep.mubr.bf16.mxu0 0
  %603 = vmatmul.mubr.bf16.gmra.mxu0 %v356
  %v604 = vpop.f32.mrf.mxu0
  %v605 = vadd.f32 %v383, %v604
  %v606 = vpop.f32.mrf.mxu0
  %v607 = vadd.f32 %v387, %v606
  %v608 = vpop.f32.mrf.mxu0
  %v609 = vadd.f32 %v383, %v608
  %v610 = vpop.f32.mrf.mxu0
  %v611 = vadd.f32 %v387, %v610
  %612 = vmatprep.mubr.bf16.mxu0 0
  %613 = vmatmul.mubr.bf16.gmra.mxu0 %v357
  %v614 = vpop.f32.mrf.mxu0
  %v615 = vadd.f32 %v383, %v614
  %v616 = vpop.f32.mrf.mxu0
  %v617 = vadd.f32 %v387, %v616
  %v618 = vpop.f32.mrf.mxu0
  %v619 = vadd.f32 %v383, %v618
  %v620 = vpop.f32.mrf.mxu0
  %v621 = vadd.f32 %v387, %v620
  %622 = vmatprep.mubr.bf16.mxu0 0
  %623 = vmatmul.mubr.bf16.gmra.mxu0 %v358
  %v624 = vpop.f32.mrf.mxu0
  %v625 = vadd.f32 %v383, %v624
  %v626 = vpop.f32.mrf.mxu0
  %v627 = vadd.f32 %v387, %v626
  %v628 = vpop.f32.mrf.mxu0
  %v629 = vadd.f32 %v383, %v628
  %v630 = vpop.f32.mrf.mxu0
  %v631 = vadd.f32 %v387, %v630
  %632 = vmatprep.mubr.bf16.mxu0 0
  %633 = vmatmul.mubr.bf16.gmra.mxu0 %v359
  %v634 = vpop.f32.mrf.mxu0
  %v635 = vadd.f32 %v383, %v634
  %v636 = vpop.f32.mrf.mxu0
  %v637 = vadd.f32 %v387, %v636
  %v638 = vpop.f32.mrf.mxu0
  %v639 = vadd.f32 %v383, %v638
  %v640 = vpop.f32.mrf.mxu0
  %v641 = vadd.f32 %v387, %v640
  %642 = vmatprep.mubr.bf16.mxu0 0
  %643 = vmatmul.mubr.bf16.gmra.mxu0 %v360
  %v644 = vpop.f32.mrf.mxu0
  %v645 = vadd.f32 %v383, %v644
  %v646 = vpop.f32.mrf.mxu0
  %v647 = vadd.f32 %v387, %v646
  %v648 = vpop.f32.mrf.mxu0
  %v649 = vadd.f32 %v383, %v648
  %v650 = vpop.f32.mrf.mxu0
  %v651 = vadd.f32 %v387, %v650
  %652 = vmatprep.mubr.bf16.mxu0 0
  %653 = vmatmul.mubr.bf16.gmra.mxu0 %v361
  %v654 = vpop.f32.mrf.mxu0
  %v655 = vadd.f32 %v383, %v654
  %v656 = vpop.f32.mrf.mxu0
  %v657 = vadd.f32 %v387, %v656
  %v658 = vpop.f32.mrf.mxu0
  %v659 = vadd.f32 %v383, %v658
  %v660 = vpop.f32.mrf.mxu0
  %v661 = vadd.f32 %v387, %v660
  %662 = vdwg.mxu0
  %v663 = vmax.f32 %v505, 0.0
  %v664 = vmax.f32 %v507, 0.0
  %v665 = vmax.f32 %v509, 0.0
  %v666 = vmax.f32 %v511, 0.0
  %v667 = vmax.f32 %v515, 0.0
  %v668 = vmax.f32 %v517, 0.0
  %v669 = vmax.f32 %v519, 0.0
  %v670 = vmax.f32 %v521, 0.0
  %v671 = vmax.f32 %v525, 0.0
  %v672 = vmax.f32 %v527, 0.0
  %v673 = vmax.f32 %v529, 0.0
  %v674 = vmax.f32 %v531, 0.0
  %v675 = vmax.f32 %v535, 0.0
  %v676 = vmax.f32 %v537, 0.0
  %v677 = vmax.f32 %v539, 0.0
  %v678 = vmax.f32 %v541, 0.0
  %v679 = vmax.f32 %v545, 0.0
  %v680 = vmax.f32 %v547, 0.0
  %v681 = vmax.f32 %v549, 0.0
  %v682 = vmax.f32 %v551, 0.0
  %v683 = vmax.f32 %v555, 0.0
  %v684 = vmax.f32 %v557, 0.0
  %v685 = vmax.f32 %v559, 0.0
  %v686 = vmax.f32 %v561, 0.0
  %v687 = vmax.f32 %v565, 0.0
  %v688 = vmax.f32 %v567, 0.0
  %v689 = vmax.f32 %v569, 0.0
  %v690 = vmax.f32 %v571, 0.0
  %v691 = vmax.f32 %v575, 0.0
  %v692 = vmax.f32 %v577, 0.0
  %v693 = vmax.f32 %v579, 0.0
  %v694 = vmax.f32 %v581, 0.0
  %v695 = vmax.f32 %v585, 0.0
  %v696 = vmax.f32 %v587, 0.0
  %v697 = vmax.f32 %v589, 0.0
  %v698 = vmax.f32 %v591, 0.0
  %v699 = vmax.f32 %v595, 0.0
  %v700 = vmax.f32 %v597, 0.0
  %v701 = vmax.f32 %v599, 0.0
  %v702 = vmax.f32 %v601, 0.0
  %v703 = vmax.f32 %v605, 0.0
  %v704 = vmax.f32 %v607, 0.0
  %v705 = vmax.f32 %v609, 0.0
  %v706 = vmax.f32 %v611, 0.0
  %v707 = vmax.f32 %v615, 0.0
  %v708 = vmax.f32 %v617, 0.0
  %v709 = vmax.f32 %v619, 0.0
  %v710 = vmax.f32 %v621, 0.0
  %v711 = vmax.f32 %v625, 0.0
  %v712 = vmax.f32 %v627, 0.0
  %v713 = vmax.f32 %v629, 0.0
  %v714 = vmax.f32 %v631, 0.0
  %v715 = vmax.f32 %v635, 0.0
  %v716 = vmax.f32 %v637, 0.0
  %v717 = vmax.f32 %v639, 0.0
  %v718 = vmax.f32 %v641, 0.0
  %v719 = vmax.f32 %v645, 0.0
  %v720 = vmax.f32 %v647, 0.0
  %v721 = vmax.f32 %v649, 0.0
  %v722 = vmax.f32 %v651, 0.0
  %v723 = vmax.f32 %v655, 0.0
  %v724 = vmax.f32 %v657, 0.0
  %v725 = vmax.f32 %v659, 0.0
  %v726 = vmax.f32 %v661, 0.0
  %v727 = vpack.c.bf16 %v665, %v663
  %v728 = vpack.c.bf16 %v666, %v664
  %v729 = vpack.c.bf16 %v669, %v667
  %v730 = vpack.c.bf16 %v670, %v668
  %v731 = vpack.c.bf16 %v673, %v671
  %v732 = vpack.c.bf16 %v674, %v672
  %v733 = vpack.c.bf16 %v677, %v675
  %v734 = vpack.c.bf16 %v678, %v676
  %v735 = vpack.c.bf16 %v681, %v679
  %v736 = vpack.c.bf16 %v682, %v680
  %v737 = vpack.c.bf16 %v685, %v683
  %v738 = vpack.c.bf16 %v686, %v684
  %v739 = vpack.c.bf16 %v689, %v687
  %v740 = vpack.c.bf16 %v690, %v688
  %v741 = vpack.c.bf16 %v693, %v691
  %v742 = vpack.c.bf16 %v694, %v692
  %v743 = vpack.c.bf16 %v697, %v695
  %v744 = vpack.c.bf16 %v698, %v696
  %v745 = vpack.c.bf16 %v701, %v699
  %v746 = vpack.c.bf16 %v702, %v700
  %v747 = vpack.c.bf16 %v705, %v703
  %v748 = vpack.c.bf16 %v706, %v704
  %v749 = vpack.c.bf16 %v709, %v707
  %v750 = vpack.c.bf16 %v710, %v708
  %v751 = vpack.c.bf16 %v713, %v711
  %v752 = vpack.c.bf16 %v714, %v712
  %v753 = vpack.c.bf16 %v717, %v715
  %v754 = vpack.c.bf16 %v718, %v716
  %v755 = vpack.c.bf16 %v721, %v719
  %v756 = vpack.c.bf16 %v722, %v720
  %v757 = vpack.c.bf16 %v725, %v723
  %v758 = vpack.c.bf16 %v726, %v724
  %v759 = vld [vmem:[%s5] sm:$0xff]
  %v760 = vld [vmem:[%s5 + $0x8] sm:$0xff]
  %v761 = vld [vmem:[%s5 + $0x10] sm:$0xff]
  %v762 = vld [vmem:[%s5 + $0x18] sm:$0xff]
  %v763 = vld [vmem:[%s5 + $0x20] sm:$0xff]
  %v764 = vld [vmem:[%s5 + $0x28] sm:$0xff]
  %v765 = vld [vmem:[%s5 + $0x30] sm:$0xff]
  %v766 = vld [vmem:[%s5 + $0x38] sm:$0xff]
  %v767 = vld [vmem:[%s5 + $0x40] sm:$0xff]
  %v768 = vld [vmem:[%s5 + $0x48] sm:$0xff]
  %v769 = vld [vmem:[%s5 + $0x50] sm:$0xff]
  %v770 = vld [vmem:[%s5 + $0x58] sm:$0xff]
  %v771 = vld [vmem:[%s5 + $0x60] sm:$0xff]
  %v772 = vld [vmem:[%s5 + $0x68] sm:$0xff]
  %v773 = vld [vmem:[%s5 + $0x70] sm:$0xff]
  %v774 = vld [vmem:[%s5 + $0x78] sm:$0xff]
  %v775 = vld [vmem:[%s5 + $0x80] sm:$0xff]
  %v776 = vld [vmem:[%s5 + $0x88] sm:$0xff]
  %v777 = vld [vmem:[%s5 + $0x90] sm:$0xff]
  %v778 = vld [vmem:[%s5 + $0x98] sm:$0xff]
  %v779 = vld [vmem:[%s5 + $0xa0] sm:$0xff]
  %v780 = vld [vmem:[%s5 + $0xa8] sm:$0xff]
  %v781 = vld [vmem:[%s5 + $0xb0] sm:$0xff]
  %v782 = vld [vmem:[%s5 + $0xb8] sm:$0xff]
  %v783 = vld [vmem:[%s5 + $0xc0] sm:$0xff]
  %v784 = vld [vmem:[%s5 + $0xc8] sm:$0xff]
  %v785 = vld [vmem:[%s5 + $0xd0] sm:$0xff]
  %v786 = vld [vmem:[%s5 + $0xd8] sm:$0xff]
  %v787 = vld [vmem:[%s5 + $0xe0] sm:$0xff]
  %v788 = vld [vmem:[%s5 + $0xe8] sm:$0xff]
  %v789 = vld [vmem:[%s5 + $0xf0] sm:$0xff]
  %v790 = vld [vmem:[%s5 + $0xf8] sm:$0xff]
  %v791 = vld [vmem:[%s5 + $0x100] sm:$0xff]
  %v792 = vld [vmem:[%s5 + $0x108] sm:$0xff]
  %v793 = vld [vmem:[%s5 + $0x110] sm:$0xff]
  %v794 = vld [vmem:[%s5 + $0x118] sm:$0xff]
  %v795 = vld [vmem:[%s5 + $0x120] sm:$0xff]
  %v796 = vld [vmem:[%s5 + $0x128] sm:$0xff]
  %v797 = vld [vmem:[%s5 + $0x130] sm:$0xff]
  %v798 = vld [vmem:[%s5 + $0x138] sm:$0xff]
  %v799 = vld [vmem:[%s5 + $0x140] sm:$0xff]
  %v800 = vld [vmem:[%s5 + $0x148] sm:$0xff]
  %v801 = vld [vmem:[%s5 + $0x150] sm:$0xff]
  %v802 = vld [vmem:[%s5 + $0x158] sm:$0xff]
  %v803 = vld [vmem:[%s5 + $0x160] sm:$0xff]
  %v804 = vld [vmem:[%s5 + $0x168] sm:$0xff]
  %v805 = vld [vmem:[%s5 + $0x170] sm:$0xff]
  %v806 = vld [vmem:[%s5 + $0x178] sm:$0xff]
  %v807 = vld [vmem:[%s5 + $0x180] sm:$0xff]
  %v808 = vld [vmem:[%s5 + $0x188] sm:$0xff]
  %v809 = vld [vmem:[%s5 + $0x190] sm:$0xff]
  %v810 = vld [vmem:[%s5 + $0x198] sm:$0xff]
  %v811 = vld [vmem:[%s5 + $0x1a0] sm:$0xff]
  %v812 = vld [vmem:[%s5 + $0x1a8] sm:$0xff]
  %v813 = vld [vmem:[%s5 + $0x1b0] sm:$0xff]
  %v814 = vld [vmem:[%s5 + $0x1b8] sm:$0xff]
  %v815 = vld [vmem:[%s5 + $0x1c0] sm:$0xff]
  %v816 = vld [vmem:[%s5 + $0x1c8] sm:$0xff]
  %v817 = vld [vmem:[%s5 + $0x1d0] sm:$0xff]
  %v818 = vld [vmem:[%s5 + $0x1d8] sm:$0xff]
  %v819 = vld [vmem:[%s5 + $0x1e0] sm:$0xff]
  %v820 = vld [vmem:[%s5 + $0x1e8] sm:$0xff]
  %v821 = vld [vmem:[%s5 + $0x1f0] sm:$0xff]
  %v822 = vld [vmem:[%s5 + $0x1f8] sm:$0xff]
  %v823 = vld [vmem:[%s6] sm:$0xf]
  %v825 = vlaneseq
  %v826 = vshrl.u32 %v825, 7
  %v827 = vsub.s32 0, %v826
  %v828 = vrot.slane %v823, %v827
  %v829 = vlaneseq
  %v830 = vshrl.u32 %v829, 7
  %v831 = vsub.s32 1, %v830
  %v832 = vrot.slane %v823, %v831
  %v833 = vlaneseq
  %v834 = vshrl.u32 %v833, 7
  %v835 = vsub.s32 2, %v834
  %v836 = vrot.slane %v823, %v835
  %v837 = vlaneseq
  %v838 = vshrl.u32 %v837, 7
  %v839 = vsub.s32 3, %v838
  %v840 = vrot.slane %v823, %v839
  %v909 = vunpack.c.l.b16 %v759
  %v910 = vunpack.c.h.b16 %v759
  %v911 = vunpack.c.l.b16 %v760
  %v912 = vunpack.c.h.b16 %v760
  %v913 = vunpack.c.l.b16 %v761
  %v914 = vunpack.c.h.b16 %v761
  %v915 = vunpack.c.l.b16 %v762
  %v916 = vunpack.c.h.b16 %v762
  %v917 = vunpack.c.l.b16 %v763
  %v918 = vunpack.c.h.b16 %v763
  %v919 = vunpack.c.l.b16 %v764
  %v920 = vunpack.c.h.b16 %v764
  %v921 = vunpack.c.l.b16 %v765
  %v922 = vunpack.c.h.b16 %v765
  %v923 = vunpack.c.l.b16 %v766
  %v924 = vunpack.c.h.b16 %v766
  %v925 = vunpack.c.l.b16 %v767
  %v926 = vunpack.c.h.b16 %v767
  %v927 = vunpack.c.l.b16 %v768
  %v928 = vunpack.c.h.b16 %v768
  %v929 = vunpack.c.l.b16 %v769
  %v930 = vunpack.c.h.b16 %v769
  %v931 = vunpack.c.l.b16 %v770
  %v932 = vunpack.c.h.b16 %v770
  %v933 = vunpack.c.l.b16 %v771
  %v934 = vunpack.c.h.b16 %v771
  %v935 = vunpack.c.l.b16 %v772
  %v936 = vunpack.c.h.b16 %v772
  %v937 = vunpack.c.l.b16 %v773
  %v938 = vunpack.c.h.b16 %v773
  %v939 = vunpack.c.l.b16 %v774
  %v940 = vunpack.c.h.b16 %v774
  %v941 = vunpack.c.l.b16 %v775
  %v942 = vunpack.c.h.b16 %v775
  %v943 = vunpack.c.l.b16 %v776
  %v944 = vunpack.c.h.b16 %v776
  %v945 = vunpack.c.l.b16 %v777
  %v946 = vunpack.c.h.b16 %v777
  %v947 = vunpack.c.l.b16 %v778
  %v948 = vunpack.c.h.b16 %v778
  %v949 = vunpack.c.l.b16 %v779
  %v950 = vunpack.c.h.b16 %v779
  %v951 = vunpack.c.l.b16 %v780
  %v952 = vunpack.c.h.b16 %v780
  %v953 = vunpack.c.l.b16 %v781
  %v954 = vunpack.c.h.b16 %v781
  %v955 = vunpack.c.l.b16 %v782
  %v956 = vunpack.c.h.b16 %v782
  %v957 = vunpack.c.l.b16 %v783
  %v958 = vunpack.c.h.b16 %v783
  %v959 = vunpack.c.l.b16 %v784
  %v960 = vunpack.c.h.b16 %v784
  %v961 = vunpack.c.l.b16 %v785
  %v962 = vunpack.c.h.b16 %v785
  %v963 = vunpack.c.l.b16 %v786
  %v964 = vunpack.c.h.b16 %v786
  %v965 = vunpack.c.l.b16 %v787
  %v966 = vunpack.c.h.b16 %v787
  %v967 = vunpack.c.l.b16 %v788
  %v968 = vunpack.c.h.b16 %v788
  %v969 = vunpack.c.l.b16 %v789
  %v970 = vunpack.c.h.b16 %v789
  %v971 = vunpack.c.l.b16 %v790
  %v972 = vunpack.c.h.b16 %v790
  %v973 = vunpack.c.l.b16 %v791
  %v974 = vunpack.c.h.b16 %v791
  %v975 = vunpack.c.l.b16 %v792
  %v976 = vunpack.c.h.b16 %v792
  %v977 = vunpack.c.l.b16 %v793
  %v978 = vunpack.c.h.b16 %v793
  %v979 = vunpack.c.l.b16 %v794
  %v980 = vunpack.c.h.b16 %v794
  %v981 = vunpack.c.l.b16 %v795
  %v982 = vunpack.c.h.b16 %v795
  %v983 = vunpack.c.l.b16 %v796
  %v984 = vunpack.c.h.b16 %v796
  %v985 = vunpack.c.l.b16 %v797
  %v986 = vunpack.c.h.b16 %v797
  %v987 = vunpack.c.l.b16 %v798
  %v988 = vunpack.c.h.b16 %v798
  %v989 = vunpack.c.l.b16 %v799
  %v990 = vunpack.c.h.b16 %v799
  %v991 = vunpack.c.l.b16 %v800
  %v992 = vunpack.c.h.b16 %v800
  %v993 = vunpack.c.l.b16 %v801
  %v994 = vunpack.c.h.b16 %v801
  %v995 = vunpack.c.l.b16 %v802
  %v996 = vunpack.c.h.b16 %v802
  %v997 = vunpack.c.l.b16 %v803
  %v998 = vunpack.c.h.b16 %v803
  %v999 = vunpack.c.l.b16 %v804
  %v1000 = vunpack.c.h.b16 %v804
  %v1001 = vunpack.c.l.b16 %v805
  %v1002 = vunpack.c.h.b16 %v805
  %v1003 = vunpack.c.l.b16 %v806
  %v1004 = vunpack.c.h.b16 %v806
  %v1005 = vunpack.c.l.b16 %v807
  %v1006 = vunpack.c.h.b16 %v807
  %v1007 = vunpack.c.l.b16 %v808
  %v1008 = vunpack.c.h.b16 %v808
  %v1009 = vunpack.c.l.b16 %v809
  %v1010 = vunpack.c.h.b16 %v809
  %v1011 = vunpack.c.l.b16 %v810
  %v1012 = vunpack.c.h.b16 %v810
  %v1013 = vunpack.c.l.b16 %v811
  %v1014 = vunpack.c.h.b16 %v811
  %v1015 = vunpack.c.l.b16 %v812
  %v1016 = vunpack.c.h.b16 %v812
  %v1017 = vunpack.c.l.b16 %v813
  %v1018 = vunpack.c.h.b16 %v813
  %v1019 = vunpack.c.l.b16 %v814
  %v1020 = vunpack.c.h.b16 %v814
  %v1021 = vunpack.c.l.b16 %v815
  %v1022 = vunpack.c.h.b16 %v815
  %v1023 = vunpack.c.l.b16 %v816
  %v1024 = vunpack.c.h.b16 %v816
  %v1025 = vunpack.c.l.b16 %v817
  %v1026 = vunpack.c.h.b16 %v817
  %v1027 = vunpack.c.l.b16 %v818
  %v1028 = vunpack.c.h.b16 %v818
  %v1029 = vunpack.c.l.b16 %v819
  %v1030 = vunpack.c.h.b16 %v819
  %v1031 = vunpack.c.l.b16 %v820
  %v1032 = vunpack.c.h.b16 %v820
  %v1033 = vunpack.c.l.b16 %v821
  %v1034 = vunpack.c.h.b16 %v821
  %v1035 = vunpack.c.l.b16 %v822
  %v1036 = vunpack.c.h.b16 %v822
  %v1037 = vpack.c.b16 %v913, %v909
  %v1038 = vpack.c.b16 %v914, %v910
  %v1039 = vpack.c.b16 %v915, %v911
  %v1040 = vpack.c.b16 %v916, %v912
  %v1041 = vpack.c.b16 %v921, %v917
  %v1042 = vpack.c.b16 %v922, %v918
  %v1043 = vpack.c.b16 %v923, %v919
  %v1044 = vpack.c.b16 %v924, %v920
  %v1045 = vpack.c.b16 %v929, %v925
  %v1046 = vpack.c.b16 %v930, %v926
  %v1047 = vpack.c.b16 %v931, %v927
  %v1048 = vpack.c.b16 %v932, %v928
  %v1049 = vpack.c.b16 %v937, %v933
  %v1050 = vpack.c.b16 %v938, %v934
  %v1051 = vpack.c.b16 %v939, %v935
  %v1052 = vpack.c.b16 %v940, %v936
  %v1053 = vpack.c.b16 %v945, %v941
  %v1054 = vpack.c.b16 %v946, %v942
  %v1055 = vpack.c.b16 %v947, %v943
  %v1056 = vpack.c.b16 %v948, %v944
  %v1057 = vpack.c.b16 %v953, %v949
  %v1058 = vpack.c.b16 %v954, %v950
  %v1059 = vpack.c.b16 %v955, %v951
  %v1060 = vpack.c.b16 %v956, %v952
  %v1061 = vpack.c.b16 %v961, %v957
  %v1062 = vpack.c.b16 %v962, %v958
  %v1063 = vpack.c.b16 %v963, %v959
  %v1064 = vpack.c.b16 %v964, %v960
  %v1065 = vpack.c.b16 %v969, %v965
  %v1066 = vpack.c.b16 %v970, %v966
  %v1067 = vpack.c.b16 %v971, %v967
  %v1068 = vpack.c.b16 %v972, %v968
  %v1069 = vpack.c.b16 %v977, %v973
  %v1070 = vpack.c.b16 %v978, %v974
  %v1071 = vpack.c.b16 %v979, %v975
  %v1072 = vpack.c.b16 %v980, %v976
  %v1073 = vpack.c.b16 %v985, %v981
  %v1074 = vpack.c.b16 %v986, %v982
  %v1075 = vpack.c.b16 %v987, %v983
  %v1076 = vpack.c.b16 %v988, %v984
  %v1077 = vpack.c.b16 %v993, %v989
  %v1078 = vpack.c.b16 %v994, %v990
  %v1079 = vpack.c.b16 %v995, %v991
  %v1080 = vpack.c.b16 %v996, %v992
  %v1081 = vpack.c.b16 %v1001, %v997
  %v1082 = vpack.c.b16 %v1002, %v998
  %v1083 = vpack.c.b16 %v1003, %v999
  %v1084 = vpack.c.b16 %v1004, %v1000
  %v1085 = vpack.c.b16 %v1009, %v1005
  %v1086 = vpack.c.b16 %v1010, %v1006
  %v1087 = vpack.c.b16 %v1011, %v1007
  %v1088 = vpack.c.b16 %v1012, %v1008
  %v1089 = vpack.c.b16 %v1017, %v1013
  %v1090 = vpack.c.b16 %v1018, %v1014
  %v1091 = vpack.c.b16 %v1019, %v1015
  %v1092 = vpack.c.b16 %v1020, %v1016
  %v1093 = vpack.c.b16 %v1025, %v1021
  %v1094 = vpack.c.b16 %v1026, %v1022
  %v1095 = vpack.c.b16 %v1027, %v1023
  %v1096 = vpack.c.b16 %v1028, %v1024
  %v1097 = vpack.c.b16 %v1033, %v1029
  %v1098 = vpack.c.b16 %v1034, %v1030
  %v1099 = vpack.c.b16 %v1035, %v1031
  %v1100 = vpack.c.b16 %v1036, %v1032
  %1165 = vmatprep.subr.bf16.mxu0 %v1066
  %1166 = vmatpush1.bf16.msra.mxu0 %v1065
  %1167 = vmatprep.subr.bf16.mxu0 %v1062
  %1168 = vmatpush1.bf16.msra.mxu0 %v1061
  %1169 = vmatprep.subr.bf16.mxu0 %v1058
  %1170 = vmatpush1.bf16.msra.mxu0 %v1057
  %1171 = vmatprep.subr.bf16.mxu0 %v1054
  %1172 = vmatpush1.bf16.msra.mxu0 %v1053
  %1173 = vmatprep.subr.bf16.mxu0 %v1050
  %1174 = vmatpush1.bf16.msra.mxu0 %v1049
  %1175 = vmatprep.subr.bf16.mxu0 %v1046
  %1176 = vmatpush1.bf16.msra.mxu0 %v1045
  %1177 = vmatprep.subr.bf16.mxu0 %v1042
  %1178 = vmatpush1.bf16.msra.mxu0 %v1041
  %1179 = vmatprep.subr.bf16.mxu0 %v1038
  %1180 = vmatpush1.bf16.msra.mxu0 %v1037
  %1181 = vmatprep.subr.bf16.mxu0 %v1098
  %1182 = vmatpush2.bf16.msra.mxu0 %v1097
  %1183 = vmatprep.subr.bf16.mxu0 %v1094
  %1184 = vmatpush2.bf16.msra.mxu0 %v1093
  %1185 = vmatprep.subr.bf16.mxu0 %v1090
  %1186 = vmatpush2.bf16.msra.mxu0 %v1089
  %1187 = vmatprep.subr.bf16.mxu0 %v1086
  %1188 = vmatpush2.bf16.msra.mxu0 %v1085
  %1189 = vmatprep.subr.bf16.mxu0 %v1082
  %1190 = vmatpush2.bf16.msra.mxu0 %v1081
  %1191 = vmatprep.subr.bf16.mxu0 %v1078
  %1192 = vmatpush2.bf16.msra.mxu0 %v1077
  %1193 = vmatprep.subr.bf16.mxu0 %v1074
  %1194 = vmatpush2.bf16.msra.mxu0 %v1073
  %1195 = vmatprep.subr.bf16.mxu0 %v1070
  %1196 = vmatpush2.bf16.msra.mxu0 %v1069
  %1197 = vmatprep.mubr.bf16.mxu0 %v728
  %1198 = vmatmul.mubr.bf16.gmra.mxu0 %v727
  %v1199 = vpop.f32.mrf.mxu0
  %v1200 = vadd.f32 %v828, %v1199
  %v1201 = vpop.f32.mrf.mxu0
  %v1202 = vadd.f32 %v832, %v1201
  %v1203 = vpop.f32.mrf.mxu0
  %v1204 = vadd.f32 %v828, %v1203
  %v1205 = vpop.f32.mrf.mxu0
  %v1206 = vadd.f32 %v832, %v1205
  %1207 = vmatprep.mubr.bf16.mxu0 %v730
  %1208 = vmatmul.mubr.bf16.gmra.mxu0 %v729
  %v1209 = vpop.f32.mrf.mxu0
  %v1210 = vadd.f32 %v828, %v1209
  %v1211 = vpop.f32.mrf.mxu0
  %v1212 = vadd.f32 %v832, %v1211
  %v1213 = vpop.f32.mrf.mxu0
  %v1214 = vadd.f32 %v828, %v1213
  %v1215 = vpop.f32.mrf.mxu0
  %v1216 = vadd.f32 %v832, %v1215
  %1217 = vmatprep.mubr.bf16.mxu0 %v732
  %1218 = vmatmul.mubr.bf16.gmra.mxu0 %v731
  %v1219 = vpop.f32.mrf.mxu0
  %v1220 = vadd.f32 %v828, %v1219
  %v1221 = vpop.f32.mrf.mxu0
  %v1222 = vadd.f32 %v832, %v1221
  %v1223 = vpop.f32.mrf.mxu0
  %v1224 = vadd.f32 %v828, %v1223
  %v1225 = vpop.f32.mrf.mxu0
  %v1226 = vadd.f32 %v832, %v1225
  %1227 = vmatprep.mubr.bf16.mxu0 %v734
  %1228 = vmatmul.mubr.bf16.gmra.mxu0 %v733
  %v1229 = vpop.f32.mrf.mxu0
  %v1230 = vadd.f32 %v828, %v1229
  %v1231 = vpop.f32.mrf.mxu0
  %v1232 = vadd.f32 %v832, %v1231
  %v1233 = vpop.f32.mrf.mxu0
  %v1234 = vadd.f32 %v828, %v1233
  %v1235 = vpop.f32.mrf.mxu0
  %v1236 = vadd.f32 %v832, %v1235
  %1237 = vmatprep.mubr.bf16.mxu0 %v736
  %1238 = vmatmul.mubr.bf16.gmra.mxu0 %v735
  %v1239 = vpop.f32.mrf.mxu0
  %v1240 = vadd.f32 %v828, %v1239
  %v1241 = vpop.f32.mrf.mxu0
  %v1242 = vadd.f32 %v832, %v1241
  %v1243 = vpop.f32.mrf.mxu0
  %v1244 = vadd.f32 %v828, %v1243
  %v1245 = vpop.f32.mrf.mxu0
  %v1246 = vadd.f32 %v832, %v1245
  %1247 = vmatprep.mubr.bf16.mxu0 %v738
  %1248 = vmatmul.mubr.bf16.gmra.mxu0 %v737
  %v1249 = vpop.f32.mrf.mxu0
  %v1250 = vadd.f32 %v828, %v1249
  %v1251 = vpop.f32.mrf.mxu0
  %v1252 = vadd.f32 %v832, %v1251
  %v1253 = vpop.f32.mrf.mxu0
  %v1254 = vadd.f32 %v828, %v1253
  %v1255 = vpop.f32.mrf.mxu0
  %v1256 = vadd.f32 %v832, %v1255
  %1257 = vmatprep.mubr.bf16.mxu0 %v740
  %1258 = vmatmul.mubr.bf16.gmra.mxu0 %v739
  %v1259 = vpop.f32.mrf.mxu0
  %v1260 = vadd.f32 %v828, %v1259
  %v1261 = vpop.f32.mrf.mxu0
  %v1262 = vadd.f32 %v832, %v1261
  %v1263 = vpop.f32.mrf.mxu0
  %v1264 = vadd.f32 %v828, %v1263
  %v1265 = vpop.f32.mrf.mxu0
  %v1266 = vadd.f32 %v832, %v1265
  %1267 = vmatprep.mubr.bf16.mxu0 %v742
  %1268 = vmatmul.mubr.bf16.gmra.mxu0 %v741
  %v1269 = vpop.f32.mrf.mxu0
  %v1270 = vadd.f32 %v828, %v1269
  %v1271 = vpop.f32.mrf.mxu0
  %v1272 = vadd.f32 %v832, %v1271
  %v1273 = vpop.f32.mrf.mxu0
  %v1274 = vadd.f32 %v828, %v1273
  %v1275 = vpop.f32.mrf.mxu0
  %v1276 = vadd.f32 %v832, %v1275
  %1277 = vmatprep.mubr.bf16.mxu0 %v744
  %1278 = vmatmul.mubr.bf16.gmra.mxu0 %v743
  %v1279 = vpop.f32.mrf.mxu0
  %v1280 = vadd.f32 %v828, %v1279
  %v1281 = vpop.f32.mrf.mxu0
  %v1282 = vadd.f32 %v832, %v1281
  %v1283 = vpop.f32.mrf.mxu0
  %v1284 = vadd.f32 %v828, %v1283
  %v1285 = vpop.f32.mrf.mxu0
  %v1286 = vadd.f32 %v832, %v1285
  %1287 = vmatprep.mubr.bf16.mxu0 %v746
  %1288 = vmatmul.mubr.bf16.gmra.mxu0 %v745
  %v1289 = vpop.f32.mrf.mxu0
  %v1290 = vadd.f32 %v828, %v1289
  %v1291 = vpop.f32.mrf.mxu0
  %v1292 = vadd.f32 %v832, %v1291
  %v1293 = vpop.f32.mrf.mxu0
  %v1294 = vadd.f32 %v828, %v1293
  %v1295 = vpop.f32.mrf.mxu0
  %v1296 = vadd.f32 %v832, %v1295
  %1297 = vmatprep.mubr.bf16.mxu0 %v748
  %1298 = vmatmul.mubr.bf16.gmra.mxu0 %v747
  %v1299 = vpop.f32.mrf.mxu0
  %v1300 = vadd.f32 %v828, %v1299
  %v1301 = vpop.f32.mrf.mxu0
  %v1302 = vadd.f32 %v832, %v1301
  %v1303 = vpop.f32.mrf.mxu0
  %v1304 = vadd.f32 %v828, %v1303
  %v1305 = vpop.f32.mrf.mxu0
  %v1306 = vadd.f32 %v832, %v1305
  %1307 = vmatprep.mubr.bf16.mxu0 %v750
  %1308 = vmatmul.mubr.bf16.gmra.mxu0 %v749
  %v1309 = vpop.f32.mrf.mxu0
  %v1310 = vadd.f32 %v828, %v1309
  %v1311 = vpop.f32.mrf.mxu0
  %v1312 = vadd.f32 %v832, %v1311
  %v1313 = vpop.f32.mrf.mxu0
  %v1314 = vadd.f32 %v828, %v1313
  %v1315 = vpop.f32.mrf.mxu0
  %v1316 = vadd.f32 %v832, %v1315
  %1317 = vmatprep.mubr.bf16.mxu0 %v752
  %1318 = vmatmul.mubr.bf16.gmra.mxu0 %v751
  %v1319 = vpop.f32.mrf.mxu0
  %v1320 = vadd.f32 %v828, %v1319
  %v1321 = vpop.f32.mrf.mxu0
  %v1322 = vadd.f32 %v832, %v1321
  %v1323 = vpop.f32.mrf.mxu0
  %v1324 = vadd.f32 %v828, %v1323
  %v1325 = vpop.f32.mrf.mxu0
  %v1326 = vadd.f32 %v832, %v1325
  %1327 = vmatprep.mubr.bf16.mxu0 %v754
  %1328 = vmatmul.mubr.bf16.gmra.mxu0 %v753
  %v1329 = vpop.f32.mrf.mxu0
  %v1330 = vadd.f32 %v828, %v1329
  %v1331 = vpop.f32.mrf.mxu0
  %v1332 = vadd.f32 %v832, %v1331
  %v1333 = vpop.f32.mrf.mxu0
  %v1334 = vadd.f32 %v828, %v1333
  %v1335 = vpop.f32.mrf.mxu0
  %v1336 = vadd.f32 %v832, %v1335
  %1337 = vmatprep.mubr.bf16.mxu0 %v756
  %1338 = vmatmul.mubr.bf16.gmra.mxu0 %v755
  %v1339 = vpop.f32.mrf.mxu0
  %v1340 = vadd.f32 %v828, %v1339
  %v1341 = vpop.f32.mrf.mxu0
  %v1342 = vadd.f32 %v832, %v1341
  %v1343 = vpop.f32.mrf.mxu0
  %v1344 = vadd.f32 %v828, %v1343
  %v1345 = vpop.f32.mrf.mxu0
  %v1346 = vadd.f32 %v832, %v1345
  %1347 = vmatprep.mubr.bf16.mxu0 %v758
  %1348 = vmatmul.mubr.bf16.gmra.mxu0 %v757
  %v1349 = vpop.f32.mrf.mxu0
  %v1350 = vadd.f32 %v828, %v1349
  %v1351 = vpop.f32.mrf.mxu0
  %v1352 = vadd.f32 %v832, %v1351
  %v1353 = vpop.f32.mrf.mxu0
  %v1354 = vadd.f32 %v828, %v1353
  %v1355 = vpop.f32.mrf.mxu0
  %v1356 = vadd.f32 %v832, %v1355
  %1357 = vdwg.mxu0
  %1358 = vmatprep.subr.bf16.mxu0 %v1068
  %1359 = vmatpush1.bf16.msra.mxu0 %v1067
  %1360 = vmatprep.subr.bf16.mxu0 %v1064
  %1361 = vmatpush1.bf16.msra.mxu0 %v1063
  %1362 = vmatprep.subr.bf16.mxu0 %v1060
  %1363 = vmatpush1.bf16.msra.mxu0 %v1059
  %1364 = vmatprep.subr.bf16.mxu0 %v1056
  %1365 = vmatpush1.bf16.msra.mxu0 %v1055
  %1366 = vmatprep.subr.bf16.mxu0 %v1052
  %1367 = vmatpush1.bf16.msra.mxu0 %v1051
  %1368 = vmatprep.subr.bf16.mxu0 %v1048
  %1369 = vmatpush1.bf16.msra.mxu0 %v1047
  %1370 = vmatprep.subr.bf16.mxu0 %v1044
  %1371 = vmatpush1.bf16.msra.mxu0 %v1043
  %1372 = vmatprep.subr.bf16.mxu0 %v1040
  %1373 = vmatpush1.bf16.msra.mxu0 %v1039
  %1374 = vmatprep.subr.bf16.mxu0 %v1100
  %1375 = vmatpush2.bf16.msra.mxu0 %v1099
  %1376 = vmatprep.subr.bf16.mxu0 %v1096
  %1377 = vmatpush2.bf16.msra.mxu0 %v1095
  %1378 = vmatprep.subr.bf16.mxu0 %v1092
  %1379 = vmatpush2.bf16.msra.mxu0 %v1091
  %1380 = vmatprep.subr.bf16.mxu0 %v1088
  %1381 = vmatpush2.bf16.msra.mxu0 %v1087
  %1382 = vmatprep.subr.bf16.mxu0 %v1084
  %1383 = vmatpush2.bf16.msra.mxu0 %v1083
  %1384 = vmatprep.subr.bf16.mxu0 %v1080
  %1385 = vmatpush2.bf16.msra.mxu0 %v1079
  %1386 = vmatprep.subr.bf16.mxu0 %v1076
  %1387 = vmatpush2.bf16.msra.mxu0 %v1075
  %1388 = vmatprep.subr.bf16.mxu0 %v1072
  %1389 = vmatpush2.bf16.msra.mxu0 %v1071
  %1390 = vmatprep.mubr.bf16.mxu0 %v728
  %1391 = vmatmul.mubr.bf16.gmra.mxu0 %v727
  %v1392 = vpop.f32.mrf.mxu0
  %v1393 = vadd.f32 %v836, %v1392
  %v1394 = vpop.f32.mrf.mxu0
  %v1395 = vadd.f32 %v840, %v1394
  %v1396 = vpop.f32.mrf.mxu0
  %v1397 = vadd.f32 %v836, %v1396
  %v1398 = vpop.f32.mrf.mxu0
  %v1399 = vadd.f32 %v840, %v1398
  %1400 = vmatprep.mubr.bf16.mxu0 %v730
  %1401 = vmatmul.mubr.bf16.gmra.mxu0 %v729
  %v1402 = vpop.f32.mrf.mxu0
  %v1403 = vadd.f32 %v836, %v1402
  %v1404 = vpop.f32.mrf.mxu0
  %v1405 = vadd.f32 %v840, %v1404
  %v1406 = vpop.f32.mrf.mxu0
  %v1407 = vadd.f32 %v836, %v1406
  %v1408 = vpop.f32.mrf.mxu0
  %v1409 = vadd.f32 %v840, %v1408
  %1410 = vmatprep.mubr.bf16.mxu0 %v732
  %1411 = vmatmul.mubr.bf16.gmra.mxu0 %v731
  %v1412 = vpop.f32.mrf.mxu0
  %v1413 = vadd.f32 %v836, %v1412
  %v1414 = vpop.f32.mrf.mxu0
  %v1415 = vadd.f32 %v840, %v1414
  %v1416 = vpop.f32.mrf.mxu0
  %v1417 = vadd.f32 %v836, %v1416
  %v1418 = vpop.f32.mrf.mxu0
  %v1419 = vadd.f32 %v840, %v1418
  %1420 = vmatprep.mubr.bf16.mxu0 %v734
  %1421 = vmatmul.mubr.bf16.gmra.mxu0 %v733
  %v1422 = vpop.f32.mrf.mxu0
  %v1423 = vadd.f32 %v836, %v1422
  %v1424 = vpop.f32.mrf.mxu0
  %v1425 = vadd.f32 %v840, %v1424
  %v1426 = vpop.f32.mrf.mxu0
  %v1427 = vadd.f32 %v836, %v1426
  %v1428 = vpop.f32.mrf.mxu0
  %v1429 = vadd.f32 %v840, %v1428
  %1430 = vmatprep.mubr.bf16.mxu0 %v736
  %1431 = vmatmul.mubr.bf16.gmra.mxu0 %v735
  %v1432 = vpop.f32.mrf.mxu0
  %v1433 = vadd.f32 %v836, %v1432
  %v1434 = vpop.f32.mrf.mxu0
  %v1435 = vadd.f32 %v840, %v1434
  %v1436 = vpop.f32.mrf.mxu0
  %v1437 = vadd.f32 %v836, %v1436
  %v1438 = vpop.f32.mrf.mxu0
  %v1439 = vadd.f32 %v840, %v1438
  %1440 = vmatprep.mubr.bf16.mxu0 %v738
  %1441 = vmatmul.mubr.bf16.gmra.mxu0 %v737
  %v1442 = vpop.f32.mrf.mxu0
  %v1443 = vadd.f32 %v836, %v1442
  %v1444 = vpop.f32.mrf.mxu0
  %v1445 = vadd.f32 %v840, %v1444
  %v1446 = vpop.f32.mrf.mxu0
  %v1447 = vadd.f32 %v836, %v1446
  %v1448 = vpop.f32.mrf.mxu0
  %v1449 = vadd.f32 %v840, %v1448
  %1450 = vmatprep.mubr.bf16.mxu0 %v740
  %1451 = vmatmul.mubr.bf16.gmra.mxu0 %v739
  %v1452 = vpop.f32.mrf.mxu0
  %v1453 = vadd.f32 %v836, %v1452
  %v1454 = vpop.f32.mrf.mxu0
  %v1455 = vadd.f32 %v840, %v1454
  %v1456 = vpop.f32.mrf.mxu0
  %v1457 = vadd.f32 %v836, %v1456
  %v1458 = vpop.f32.mrf.mxu0
  %v1459 = vadd.f32 %v840, %v1458
  %1460 = vmatprep.mubr.bf16.mxu0 %v742
  %1461 = vmatmul.mubr.bf16.gmra.mxu0 %v741
  %v1462 = vpop.f32.mrf.mxu0
  %v1463 = vadd.f32 %v836, %v1462
  %v1464 = vpop.f32.mrf.mxu0
  %v1465 = vadd.f32 %v840, %v1464
  %v1466 = vpop.f32.mrf.mxu0
  %v1467 = vadd.f32 %v836, %v1466
  %v1468 = vpop.f32.mrf.mxu0
  %v1469 = vadd.f32 %v840, %v1468
  %1470 = vmatprep.mubr.bf16.mxu0 %v744
  %1471 = vmatmul.mubr.bf16.gmra.mxu0 %v743
  %v1472 = vpop.f32.mrf.mxu0
  %v1473 = vadd.f32 %v836, %v1472
  %v1474 = vpop.f32.mrf.mxu0
  %v1475 = vadd.f32 %v840, %v1474
  %v1476 = vpop.f32.mrf.mxu0
  %v1477 = vadd.f32 %v836, %v1476
  %v1478 = vpop.f32.mrf.mxu0
  %v1479 = vadd.f32 %v840, %v1478
  %1480 = vmatprep.mubr.bf16.mxu0 %v746
  %1481 = vmatmul.mubr.bf16.gmra.mxu0 %v745
  %v1482 = vpop.f32.mrf.mxu0
  %v1483 = vadd.f32 %v836, %v1482
  %v1484 = vpop.f32.mrf.mxu0
  %v1485 = vadd.f32 %v840, %v1484
  %v1486 = vpop.f32.mrf.mxu0
  %v1487 = vadd.f32 %v836, %v1486
  %v1488 = vpop.f32.mrf.mxu0
  %v1489 = vadd.f32 %v840, %v1488
  %1490 = vmatprep.mubr.bf16.mxu0 %v748
  %1491 = vmatmul.mubr.bf16.gmra.mxu0 %v747
  %v1492 = vpop.f32.mrf.mxu0
  %v1493 = vadd.f32 %v836, %v1492
  %v1494 = vpop.f32.mrf.mxu0
  %v1495 = vadd.f32 %v840, %v1494
  %v1496 = vpop.f32.mrf.mxu0
  %v1497 = vadd.f32 %v836, %v1496
  %v1498 = vpop.f32.mrf.mxu0
  %v1499 = vadd.f32 %v840, %v1498
  %1500 = vmatprep.mubr.bf16.mxu0 %v750
  %1501 = vmatmul.mubr.bf16.gmra.mxu0 %v749
  %v1502 = vpop.f32.mrf.mxu0
  %v1503 = vadd.f32 %v836, %v1502
  %v1504 = vpop.f32.mrf.mxu0
  %v1505 = vadd.f32 %v840, %v1504
  %v1506 = vpop.f32.mrf.mxu0
  %v1507 = vadd.f32 %v836, %v1506
  %v1508 = vpop.f32.mrf.mxu0
  %v1509 = vadd.f32 %v840, %v1508
  %1510 = vmatprep.mubr.bf16.mxu0 %v752
  %1511 = vmatmul.mubr.bf16.gmra.mxu0 %v751
  %v1512 = vpop.f32.mrf.mxu0
  %v1513 = vadd.f32 %v836, %v1512
  %v1514 = vpop.f32.mrf.mxu0
  %v1515 = vadd.f32 %v840, %v1514
  %v1516 = vpop.f32.mrf.mxu0
  %v1517 = vadd.f32 %v836, %v1516
  %v1518 = vpop.f32.mrf.mxu0
  %v1519 = vadd.f32 %v840, %v1518
  %1520 = vmatprep.mubr.bf16.mxu0 %v754
  %1521 = vmatmul.mubr.bf16.gmra.mxu0 %v753
  %v1522 = vpop.f32.mrf.mxu0
  %v1523 = vadd.f32 %v836, %v1522
  %v1524 = vpop.f32.mrf.mxu0
  %v1525 = vadd.f32 %v840, %v1524
  %v1526 = vpop.f32.mrf.mxu0
  %v1527 = vadd.f32 %v836, %v1526
  %v1528 = vpop.f32.mrf.mxu0
  %v1529 = vadd.f32 %v840, %v1528
  %1530 = vmatprep.mubr.bf16.mxu0 %v756
  %1531 = vmatmul.mubr.bf16.gmra.mxu0 %v755
  %v1532 = vpop.f32.mrf.mxu0
  %v1533 = vadd.f32 %v836, %v1532
  %v1534 = vpop.f32.mrf.mxu0
  %v1535 = vadd.f32 %v840, %v1534
  %v1536 = vpop.f32.mrf.mxu0
  %v1537 = vadd.f32 %v836, %v1536
  %v1538 = vpop.f32.mrf.mxu0
  %v1539 = vadd.f32 %v840, %v1538
  %1540 = vmatprep.mubr.bf16.mxu0 %v758
  %1541 = vmatmul.mubr.bf16.gmra.mxu0 %v757
  %v1542 = vpop.f32.mrf.mxu0
  %v1543 = vadd.f32 %v836, %v1542
  %v1544 = vpop.f32.mrf.mxu0
  %v1545 = vadd.f32 %v840, %v1544
  %v1546 = vpop.f32.mrf.mxu0
  %v1547 = vadd.f32 %v836, %v1546
  %v1548 = vpop.f32.mrf.mxu0
  %v1549 = vadd.f32 %v840, %v1548
  %1550 = vdwg.mxu0
  %v1551 = vmax.f32 %v1200, 0.0
  %v1552 = vmax.f32 %v1202, 0.0
  %v1553 = vmax.f32 %v1393, 0.0
  %v1554 = vmax.f32 %v1395, 0.0
  %v1555 = vmax.f32 %v1204, 0.0
  %v1556 = vmax.f32 %v1206, 0.0
  %v1557 = vmax.f32 %v1397, 0.0
  %v1558 = vmax.f32 %v1399, 0.0
  %v1559 = vmax.f32 %v1210, 0.0
  %v1560 = vmax.f32 %v1212, 0.0
  %v1561 = vmax.f32 %v1403, 0.0
  %v1562 = vmax.f32 %v1405, 0.0
  %v1563 = vmax.f32 %v1214, 0.0
  %v1564 = vmax.f32 %v1216, 0.0
  %v1565 = vmax.f32 %v1407, 0.0
  %v1566 = vmax.f32 %v1409, 0.0
  %v1567 = vmax.f32 %v1220, 0.0
  %v1568 = vmax.f32 %v1222, 0.0
  %v1569 = vmax.f32 %v1413, 0.0
  %v1570 = vmax.f32 %v1415, 0.0
  %v1571 = vmax.f32 %v1224, 0.0
  %v1572 = vmax.f32 %v1226, 0.0
  %v1573 = vmax.f32 %v1417, 0.0
  %v1574 = vmax.f32 %v1419, 0.0
  %v1575 = vmax.f32 %v1230, 0.0
  %v1576 = vmax.f32 %v1232, 0.0
  %v1577 = vmax.f32 %v1423, 0.0
  %v1578 = vmax.f32 %v1425, 0.0
  %v1579 = vmax.f32 %v1234, 0.0
  %v1580 = vmax.f32 %v1236, 0.0
  %v1581 = vmax.f32 %v1427, 0.0
  %v1582 = vmax.f32 %v1429, 0.0
  %v1583 = vmax.f32 %v1240, 0.0
  %v1584 = vmax.f32 %v1242, 0.0
  %v1585 = vmax.f32 %v1433, 0.0
  %v1586 = vmax.f32 %v1435, 0.0
  %v1587 = vmax.f32 %v1244, 0.0
  %v1588 = vmax.f32 %v1246, 0.0
  %v1589 = vmax.f32 %v1437, 0.0
  %v1590 = vmax.f32 %v1439, 0.0
  %v1591 = vmax.f32 %v1250, 0.0
  %v1592 = vmax.f32 %v1252, 0.0
  %v1593 = vmax.f32 %v1443, 0.0
  %v1594 = vmax.f32 %v1445, 0.0
  %v1595 = vmax.f32 %v1254, 0.0
  %v1596 = vmax.f32 %v1256, 0.0
  %v1597 = vmax.f32 %v1447, 0.0
  %v1598 = vmax.f32 %v1449, 0.0
  %v1599 = vmax.f32 %v1260, 0.0
  %v1600 = vmax.f32 %v1262, 0.0
  %v1601 = vmax.f32 %v1453, 0.0
  %v1602 = vmax.f32 %v1455, 0.0
  %v1603 = vmax.f32 %v1264, 0.0
  %v1604 = vmax.f32 %v1266, 0.0
  %v1605 = vmax.f32 %v1457, 0.0
  %v1606 = vmax.f32 %v1459, 0.0
  %v1607 = vmax.f32 %v1270, 0.0
  %v1608 = vmax.f32 %v1272, 0.0
  %v1609 = vmax.f32 %v1463, 0.0
  %v1610 = vmax.f32 %v1465, 0.0
  %v1611 = vmax.f32 %v1274, 0.0
  %v1612 = vmax.f32 %v1276, 0.0
  %v1613 = vmax.f32 %v1467, 0.0
  %v1614 = vmax.f32 %v1469, 0.0
  %v1615 = vmax.f32 %v1280, 0.0
  %v1616 = vmax.f32 %v1282, 0.0
  %v1617 = vmax.f32 %v1473, 0.0
  %v1618 = vmax.f32 %v1475, 0.0
  %v1619 = vmax.f32 %v1284, 0.0
  %v1620 = vmax.f32 %v1286, 0.0
  %v1621 = vmax.f32 %v1477, 0.0
  %v1622 = vmax.f32 %v1479, 0.0
  %v1623 = vmax.f32 %v1290, 0.0
  %v1624 = vmax.f32 %v1292, 0.0
  %v1625 = vmax.f32 %v1483, 0.0
  %v1626 = vmax.f32 %v1485, 0.0
  %v1627 = vmax.f32 %v1294, 0.0
  %v1628 = vmax.f32 %v1296, 0.0
  %v1629 = vmax.f32 %v1487, 0.0
  %v1630 = vmax.f32 %v1489, 0.0
  %v1631 = vmax.f32 %v1300, 0.0
  %v1632 = vmax.f32 %v1302, 0.0
  %v1633 = vmax.f32 %v1493, 0.0
  %v1634 = vmax.f32 %v1495, 0.0
  %v1635 = vmax.f32 %v1304, 0.0
  %v1636 = vmax.f32 %v1306, 0.0
  %v1637 = vmax.f32 %v1497, 0.0
  %v1638 = vmax.f32 %v1499, 0.0
  %v1639 = vmax.f32 %v1310, 0.0
  %v1640 = vmax.f32 %v1312, 0.0
  %v1641 = vmax.f32 %v1503, 0.0
  %v1642 = vmax.f32 %v1505, 0.0
  %v1643 = vmax.f32 %v1314, 0.0
  %v1644 = vmax.f32 %v1316, 0.0
  %v1645 = vmax.f32 %v1507, 0.0
  %v1646 = vmax.f32 %v1509, 0.0
  %v1647 = vmax.f32 %v1320, 0.0
  %v1648 = vmax.f32 %v1322, 0.0
  %v1649 = vmax.f32 %v1513, 0.0
  %v1650 = vmax.f32 %v1515, 0.0
  %v1651 = vmax.f32 %v1324, 0.0
  %v1652 = vmax.f32 %v1326, 0.0
  %v1653 = vmax.f32 %v1517, 0.0
  %v1654 = vmax.f32 %v1519, 0.0
  %v1655 = vmax.f32 %v1330, 0.0
  %v1656 = vmax.f32 %v1332, 0.0
  %v1657 = vmax.f32 %v1523, 0.0
  %v1658 = vmax.f32 %v1525, 0.0
  %v1659 = vmax.f32 %v1334, 0.0
  %v1660 = vmax.f32 %v1336, 0.0
  %v1661 = vmax.f32 %v1527, 0.0
  %v1662 = vmax.f32 %v1529, 0.0
  %v1663 = vmax.f32 %v1340, 0.0
  %v1664 = vmax.f32 %v1342, 0.0
  %v1665 = vmax.f32 %v1533, 0.0
  %v1666 = vmax.f32 %v1535, 0.0
  %v1667 = vmax.f32 %v1344, 0.0
  %v1668 = vmax.f32 %v1346, 0.0
  %v1669 = vmax.f32 %v1537, 0.0
  %v1670 = vmax.f32 %v1539, 0.0
  %v1671 = vmax.f32 %v1350, 0.0
  %v1672 = vmax.f32 %v1352, 0.0
  %v1673 = vmax.f32 %v1543, 0.0
  %v1674 = vmax.f32 %v1545, 0.0
  %v1675 = vmax.f32 %v1354, 0.0
  %v1676 = vmax.f32 %v1356, 0.0
  %v1677 = vmax.f32 %v1547, 0.0
  %v1678 = vmax.f32 %v1549, 0.0
  %v1679 = vpack.c.bf16 %v1555, %v1551
  %v1680 = vpack.c.bf16 %v1556, %v1552
  %v1681 = vpack.c.bf16 %v1557, %v1553
  %v1682 = vpack.c.bf16 %v1558, %v1554
  %v1683 = vpack.c.bf16 %v1563, %v1559
  %v1684 = vpack.c.bf16 %v1564, %v1560
  %v1685 = vpack.c.bf16 %v1565, %v1561
  %v1686 = vpack.c.bf16 %v1566, %v1562
  %v1687 = vpack.c.bf16 %v1571, %v1567
  %v1688 = vpack.c.bf16 %v1572, %v1568
  %v1689 = vpack.c.bf16 %v1573, %v1569
  %v1690 = vpack.c.bf16 %v1574, %v1570
  %v1691 = vpack.c.bf16 %v1579, %v1575
  %v1692 = vpack.c.bf16 %v1580, %v1576
  %v1693 = vpack.c.bf16 %v1581, %v1577
  %v1694 = vpack.c.bf16 %v1582, %v1578
  %v1695 = vpack.c.bf16 %v1587, %v1583
  %v1696 = vpack.c.bf16 %v1588, %v1584
  %v1697 = vpack.c.bf16 %v1589, %v1585
  %v1698 = vpack.c.bf16 %v1590, %v1586
  %v1699 = vpack.c.bf16 %v1595, %v1591
  %v1700 = vpack.c.bf16 %v1596, %v1592
  %v1701 = vpack.c.bf16 %v1597, %v1593
  %v1702 = vpack.c.bf16 %v1598, %v1594
  %v1703 = vpack.c.bf16 %v1603, %v1599
  %v1704 = vpack.c.bf16 %v1604, %v1600
  %v1705 = vpack.c.bf16 %v1605, %v1601
  %v1706 = vpack.c.bf16 %v1606, %v1602
  %v1707 = vpack.c.bf16 %v1611, %v1607
  %v1708 = vpack.c.bf16 %v1612, %v1608
  %v1709 = vpack.c.bf16 %v1613, %v1609
  %v1710 = vpack.c.bf16 %v1614, %v1610
  %v1711 = vpack.c.bf16 %v1619, %v1615
  %v1712 = vpack.c.bf16 %v1620, %v1616
  %v1713 = vpack.c.bf16 %v1621, %v1617
  %v1714 = vpack.c.bf16 %v1622, %v1618
  %v1715 = vpack.c.bf16 %v1627, %v1623
  %v1716 = vpack.c.bf16 %v1628, %v1624
  %v1717 = vpack.c.bf16 %v1629, %v1625
  %v1718 = vpack.c.bf16 %v1630, %v1626
  %v1719 = vpack.c.bf16 %v1635, %v1631
  %v1720 = vpack.c.bf16 %v1636, %v1632
  %v1721 = vpack.c.bf16 %v1637, %v1633
  %v1722 = vpack.c.bf16 %v1638, %v1634
  %v1723 = vpack.c.bf16 %v1643, %v1639
  %v1724 = vpack.c.bf16 %v1644, %v1640
  %v1725 = vpack.c.bf16 %v1645, %v1641
  %v1726 = vpack.c.bf16 %v1646, %v1642
  %v1727 = vpack.c.bf16 %v1651, %v1647
  %v1728 = vpack.c.bf16 %v1652, %v1648
  %v1729 = vpack.c.bf16 %v1653, %v1649
  %v1730 = vpack.c.bf16 %v1654, %v1650
  %v1731 = vpack.c.bf16 %v1659, %v1655
  %v1732 = vpack.c.bf16 %v1660, %v1656
  %v1733 = vpack.c.bf16 %v1661, %v1657
  %v1734 = vpack.c.bf16 %v1662, %v1658
  %v1735 = vpack.c.bf16 %v1667, %v1663
  %v1736 = vpack.c.bf16 %v1668, %v1664
  %v1737 = vpack.c.bf16 %v1669, %v1665
  %v1738 = vpack.c.bf16 %v1670, %v1666
  %v1739 = vpack.c.bf16 %v1675, %v1671
  %v1740 = vpack.c.bf16 %v1676, %v1672
  %v1741 = vpack.c.bf16 %v1677, %v1673
  %v1742 = vpack.c.bf16 %v1678, %v1674
  %v1743 = vld [vmem:[%s7] sm:$0xf]
  %v1744 = vld [vmem:[%s7 + $0x4] sm:$0xf]
  %v1745 = vld [vmem:[%s7 + $0x8] sm:$0xf]
  %v1746 = vld [vmem:[%s7 + $0xc] sm:$0xf]
  %v1747 = vld [vmem:[%s7 + $0x10] sm:$0xf]
  %v1748 = vld [vmem:[%s7 + $0x14] sm:$0xf]
  %v1749 = vld [vmem:[%s7 + $0x18] sm:$0xf]
  %v1750 = vld [vmem:[%s7 + $0x1c] sm:$0xf]
  %v1751 = vld [vmem:[%s7 + $0x20] sm:$0xf]
  %v1752 = vld [vmem:[%s7 + $0x24] sm:$0xf]
  %v1753 = vld [vmem:[%s7 + $0x28] sm:$0xf]
  %v1754 = vld [vmem:[%s7 + $0x2c] sm:$0xf]
  %v1755 = vld [vmem:[%s7 + $0x30] sm:$0xf]
  %v1756 = vld [vmem:[%s7 + $0x34] sm:$0xf]
  %v1757 = vld [vmem:[%s7 + $0x38] sm:$0xf]
  %v1758 = vld [vmem:[%s7 + $0x3c] sm:$0xf]
  %v1759 = vld [vmem:[%s7 + $0x40] sm:$0xf]
  %v1760 = vld [vmem:[%s7 + $0x44] sm:$0xf]
  %v1761 = vld [vmem:[%s7 + $0x48] sm:$0xf]
  %v1762 = vld [vmem:[%s7 + $0x4c] sm:$0xf]
  %v1763 = vld [vmem:[%s7 + $0x50] sm:$0xf]
  %v1764 = vld [vmem:[%s7 + $0x54] sm:$0xf]
  %v1765 = vld [vmem:[%s7 + $0x58] sm:$0xf]
  %v1766 = vld [vmem:[%s7 + $0x5c] sm:$0xf]
  %v1767 = vld [vmem:[%s7 + $0x60] sm:$0xf]
  %v1768 = vld [vmem:[%s7 + $0x64] sm:$0xf]
  %v1769 = vld [vmem:[%s7 + $0x68] sm:$0xf]
  %v1770 = vld [vmem:[%s7 + $0x6c] sm:$0xf]
  %v1771 = vld [vmem:[%s7 + $0x70] sm:$0xf]
  %v1772 = vld [vmem:[%s7 + $0x74] sm:$0xf]
  %v1773 = vld [vmem:[%s7 + $0x78] sm:$0xf]
  %v1774 = vld [vmem:[%s7 + $0x7c] sm:$0xf]
  %v1775 = vld [vmem:[%s7 + $0x80] sm:$0xf]
  %v1776 = vld [vmem:[%s7 + $0x84] sm:$0xf]
  %v1777 = vld [vmem:[%s7 + $0x88] sm:$0xf]
  %v1778 = vld [vmem:[%s7 + $0x8c] sm:$0xf]
  %v1779 = vld [vmem:[%s7 + $0x90] sm:$0xf]
  %v1780 = vld [vmem:[%s7 + $0x94] sm:$0xf]
  %v1781 = vld [vmem:[%s7 + $0x98] sm:$0xf]
  %v1782 = vld [vmem:[%s7 + $0x9c] sm:$0xf]
  %v1783 = vld [vmem:[%s7 + $0xa0] sm:$0xf]
  %v1784 = vld [vmem:[%s7 + $0xa4] sm:$0xf]
  %v1785 = vld [vmem:[%s7 + $0xa8] sm:$0xf]
  %v1786 = vld [vmem:[%s7 + $0xac] sm:$0xf]
  %v1787 = vld [vmem:[%s7 + $0xb0] sm:$0xf]
  %v1788 = vld [vmem:[%s7 + $0xb4] sm:$0xf]
  %v1789 = vld [vmem:[%s7 + $0xb8] sm:$0xf]
  %v1790 = vld [vmem:[%s7 + $0xbc] sm:$0xf]
  %v1791 = vld [vmem:[%s7 + $0xc0] sm:$0xf]
  %v1792 = vld [vmem:[%s7 + $0xc4] sm:$0xf]
  %v1793 = vld [vmem:[%s7 + $0xc8] sm:$0xf]
  %v1794 = vld [vmem:[%s7 + $0xcc] sm:$0xf]
  %v1795 = vld [vmem:[%s7 + $0xd0] sm:$0xf]
  %v1796 = vld [vmem:[%s7 + $0xd4] sm:$0xf]
  %v1797 = vld [vmem:[%s7 + $0xd8] sm:$0xf]
  %v1798 = vld [vmem:[%s7 + $0xdc] sm:$0xf]
  %v1799 = vld [vmem:[%s7 + $0xe0] sm:$0xf]
  %v1800 = vld [vmem:[%s7 + $0xe4] sm:$0xf]
  %v1801 = vld [vmem:[%s7 + $0xe8] sm:$0xf]
  %v1802 = vld [vmem:[%s7 + $0xec] sm:$0xf]
  %v1803 = vld [vmem:[%s7 + $0xf0] sm:$0xf]
  %v1804 = vld [vmem:[%s7 + $0xf4] sm:$0xf]
  %v1805 = vld [vmem:[%s7 + $0xf8] sm:$0xf]
  %v1806 = vld [vmem:[%s7 + $0xfc] sm:$0xf]
  %v1807 = vld [vmem:[%s8] sm:$0x1]
  %v1809 = vlaneseq
  %v1810 = vshrl.u32 %v1809, 7
  %v1811 = vsub.s32 0, %v1810
  %v1812 = vrot.slane %v1807, %v1811
  %v1878 = vunpack.c.l.b16 %v1743
  %v1879 = vunpack.c.l.b16 %v1744
  %v1880 = vunpack.c.l.b16 %v1745
  %v1881 = vunpack.c.l.b16 %v1746
  %v1882 = vunpack.c.l.b16 %v1747
  %v1883 = vunpack.c.l.b16 %v1748
  %v1884 = vunpack.c.l.b16 %v1749
  %v1885 = vunpack.c.l.b16 %v1750
  %v1886 = vunpack.c.l.b16 %v1751
  %v1887 = vunpack.c.l.b16 %v1752
  %v1888 = vunpack.c.l.b16 %v1753
  %v1889 = vunpack.c.l.b16 %v1754
  %v1890 = vunpack.c.l.b16 %v1755
  %v1891 = vunpack.c.l.b16 %v1756
  %v1892 = vunpack.c.l.b16 %v1757
  %v1893 = vunpack.c.l.b16 %v1758
  %v1894 = vunpack.c.l.b16 %v1759
  %v1895 = vunpack.c.l.b16 %v1760
  %v1896 = vunpack.c.l.b16 %v1761
  %v1897 = vunpack.c.l.b16 %v1762
  %v1898 = vunpack.c.l.b16 %v1763
  %v1899 = vunpack.c.l.b16 %v1764
  %v1900 = vunpack.c.l.b16 %v1765
  %v1901 = vunpack.c.l.b16 %v1766
  %v1902 = vunpack.c.l.b16 %v1767
  %v1903 = vunpack.c.l.b16 %v1768
  %v1904 = vunpack.c.l.b16 %v1769
  %v1905 = vunpack.c.l.b16 %v1770
  %v1906 = vunpack.c.l.b16 %v1771
  %v1907 = vunpack.c.l.b16 %v1772
  %v1908 = vunpack.c.l.b16 %v1773
  %v1909 = vunpack.c.l.b16 %v1774
  %v1910 = vunpack.c.l.b16 %v1775
  %v1911 = vunpack.c.l.b16 %v1776
  %v1912 = vunpack.c.l.b16 %v1777
  %v1913 = vunpack.c.l.b16 %v1778
  %v1914 = vunpack.c.l.b16 %v1779
  %v1915 = vunpack.c.l.b16 %v1780
  %v1916 = vunpack.c.l.b16 %v1781
  %v1917 = vunpack.c.l.b16 %v1782
  %v1918 = vunpack.c.l.b16 %v1783
  %v1919 = vunpack.c.l.b16 %v1784
  %v1920 = vunpack.c.l.b16 %v1785
  %v1921 = vunpack.c.l.b16 %v1786
  %v1922 = vunpack.c.l.b16 %v1787
  %v1923 = vunpack.c.l.b16 %v1788
  %v1924 = vunpack.c.l.b16 %v1789
  %v1925 = vunpack.c.l.b16 %v1790
  %v1926 = vunpack.c.l.b16 %v1791
  %v1927 = vunpack.c.l.b16 %v1792
  %v1928 = vunpack.c.l.b16 %v1793
  %v1929 = vunpack.c.l.b16 %v1794
  %v1930 = vunpack.c.l.b16 %v1795
  %v1931 = vunpack.c.l.b16 %v1796
  %v1932 = vunpack.c.l.b16 %v1797
  %v1933 = vunpack.c.l.b16 %v1798
  %v1934 = vunpack.c.l.b16 %v1799
  %v1935 = vunpack.c.l.b16 %v1800
  %v1936 = vunpack.c.l.b16 %v1801
  %v1937 = vunpack.c.l.b16 %v1802
  %v1938 = vunpack.c.l.b16 %v1803
  %v1939 = vunpack.c.l.b16 %v1804
  %v1940 = vunpack.c.l.b16 %v1805
  %v1941 = vunpack.c.l.b16 %v1806
  %v1942 = vpack.c.b16 %v1879, %v1878
  %v1943 = vpack.c.b16 %v1881, %v1880
  %v1944 = vpack.c.b16 %v1883, %v1882
  %v1945 = vpack.c.b16 %v1885, %v1884
  %v1946 = vpack.c.b16 %v1887, %v1886
  %v1947 = vpack.c.b16 %v1889, %v1888
  %v1948 = vpack.c.b16 %v1891, %v1890
  %v1949 = vpack.c.b16 %v1893, %v1892
  %v1950 = vpack.c.b16 %v1895, %v1894
  %v1951 = vpack.c.b16 %v1897, %v1896
  %v1952 = vpack.c.b16 %v1899, %v1898
  %v1953 = vpack.c.b16 %v1901, %v1900
  %v1954 = vpack.c.b16 %v1903, %v1902
  %v1955 = vpack.c.b16 %v1905, %v1904
  %v1956 = vpack.c.b16 %v1907, %v1906
  %v1957 = vpack.c.b16 %v1909, %v1908
  %v1958 = vpack.c.b16 %v1911, %v1910
  %v1959 = vpack.c.b16 %v1913, %v1912
  %v1960 = vpack.c.b16 %v1915, %v1914
  %v1961 = vpack.c.b16 %v1917, %v1916
  %v1962 = vpack.c.b16 %v1919, %v1918
  %v1963 = vpack.c.b16 %v1921, %v1920
  %v1964 = vpack.c.b16 %v1923, %v1922
  %v1965 = vpack.c.b16 %v1925, %v1924
  %v1966 = vpack.c.b16 %v1927, %v1926
  %v1967 = vpack.c.b16 %v1929, %v1928
  %v1968 = vpack.c.b16 %v1931, %v1930
  %v1969 = vpack.c.b16 %v1933, %v1932
  %v1970 = vpack.c.b16 %v1935, %v1934
  %v1971 = vpack.c.b16 %v1937, %v1936
  %v1972 = vpack.c.b16 %v1939, %v1938
  %v1973 = vpack.c.b16 %v1941, %v1940
  %2006 = vmatprep.subr.bf16.mxu0 0
  %2007 = vmatpush1.bf16.msra.mxu0 %v1949
  %2008 = vmatprep.subr.bf16.mxu0 0
  %2009 = vmatpush1.bf16.msra.mxu0 %v1948
  %2010 = vmatprep.subr.bf16.mxu0 0
  %2011 = vmatpush1.bf16.msra.mxu0 %v1947
  %2012 = vmatprep.subr.bf16.mxu0 0
  %2013 = vmatpush1.bf16.msra.mxu0 %v1946
  %2014 = vmatprep.subr.bf16.mxu0 0
  %2015 = vmatpush1.bf16.msra.mxu0 %v1945
  %2016 = vmatprep.subr.bf16.mxu0 0
  %2017 = vmatpush1.bf16.msra.mxu0 %v1944
  %2018 = vmatprep.subr.bf16.mxu0 0
  %2019 = vmatpush1.bf16.msra.mxu0 %v1943
  %2020 = vmatprep.subr.bf16.mxu0 0
  %2021 = vmatpush1.bf16.msra.mxu0 %v1942
  %2022 = vmatprep.subr.bf16.mxu0 0
  %2023 = vmatpush2.bf16.msra.mxu0 %v1957
  %2024 = vmatprep.subr.bf16.mxu0 0
  %2025 = vmatpush2.bf16.msra.mxu0 %v1956
  %2026 = vmatprep.subr.bf16.mxu0 0
  %2027 = vmatpush2.bf16.msra.mxu0 %v1955
  %2028 = vmatprep.subr.bf16.mxu0 0
  %2029 = vmatpush2.bf16.msra.mxu0 %v1954
  %2030 = vmatprep.subr.bf16.mxu0 0
  %2031 = vmatpush2.bf16.msra.mxu0 %v1953
  %2032 = vmatprep.subr.bf16.mxu0 0
  %2033 = vmatpush2.bf16.msra.mxu0 %v1952
  %2034 = vmatprep.subr.bf16.mxu0 0
  %2035 = vmatpush2.bf16.msra.mxu0 %v1951
  %2036 = vmatprep.subr.bf16.mxu0 0
  %2037 = vmatpush2.bf16.msra.mxu0 %v1950
  %2038 = vmatprep.mubr.bf16.mxu0 %v1680
  %2039 = vmatmul.mubr.bf16.gmra.mxu0 %v1679
  %v2040 = vpop.f32.mrf.mxu0
  %v2041 = vadd.f32 %v1812, %v2040
  %v2042 = vpop.f32.mrf.mxu0
  %v2043 = vpop.f32.mrf.mxu0
  %v2044 = vadd.f32 %v1812, %v2043
  %v2045 = vpop.f32.mrf.mxu0
  %2046 = vmatprep.mubr.bf16.mxu0 %v1684
  %2047 = vmatmul.mubr.bf16.gmra.mxu0 %v1683
  %v2048 = vpop.f32.mrf.mxu0
  %v2049 = vadd.f32 %v1812, %v2048
  %v2050 = vpop.f32.mrf.mxu0
  %v2051 = vpop.f32.mrf.mxu0
  %v2052 = vadd.f32 %v1812, %v2051
  %v2053 = vpop.f32.mrf.mxu0
  %2054 = vmatprep.mubr.bf16.mxu0 %v1688
  %2055 = vmatmul.mubr.bf16.gmra.mxu0 %v1687
  %v2056 = vpop.f32.mrf.mxu0
  %v2057 = vadd.f32 %v1812, %v2056
  %v2058 = vpop.f32.mrf.mxu0
  %v2059 = vpop.f32.mrf.mxu0
  %v2060 = vadd.f32 %v1812, %v2059
  %v2061 = vpop.f32.mrf.mxu0
  %2062 = vmatprep.mubr.bf16.mxu0 %v1692
  %2063 = vmatmul.mubr.bf16.gmra.mxu0 %v1691
  %v2064 = vpop.f32.mrf.mxu0
  %v2065 = vadd.f32 %v1812, %v2064
  %v2066 = vpop.f32.mrf.mxu0
  %v2067 = vpop.f32.mrf.mxu0
  %v2068 = vadd.f32 %v1812, %v2067
  %v2069 = vpop.f32.mrf.mxu0
  %2070 = vmatprep.mubr.bf16.mxu0 %v1696
  %2071 = vmatmul.mubr.bf16.gmra.mxu0 %v1695
  %v2072 = vpop.f32.mrf.mxu0
  %v2073 = vadd.f32 %v1812, %v2072
  %v2074 = vpop.f32.mrf.mxu0
  %v2075 = vpop.f32.mrf.mxu0
  %v2076 = vadd.f32 %v1812, %v2075
  %v2077 = vpop.f32.mrf.mxu0
  %2078 = vmatprep.mubr.bf16.mxu0 %v1700
  %2079 = vmatmul.mubr.bf16.gmra.mxu0 %v1699
  %v2080 = vpop.f32.mrf.mxu0
  %v2081 = vadd.f32 %v1812, %v2080
  %v2082 = vpop.f32.mrf.mxu0
  %v2083 = vpop.f32.mrf.mxu0
  %v2084 = vadd.f32 %v1812, %v2083
  %v2085 = vpop.f32.mrf.mxu0
  %2086 = vmatprep.mubr.bf16.mxu0 %v1704
  %2087 = vmatmul.mubr.bf16.gmra.mxu0 %v1703
  %v2088 = vpop.f32.mrf.mxu0
  %v2089 = vadd.f32 %v1812, %v2088
  %v2090 = vpop.f32.mrf.mxu0
  %v2091 = vpop.f32.mrf.mxu0
  %v2092 = vadd.f32 %v1812, %v2091
  %v2093 = vpop.f32.mrf.mxu0
  %2094 = vmatprep.mubr.bf16.mxu0 %v1708
  %2095 = vmatmul.mubr.bf16.gmra.mxu0 %v1707
  %v2096 = vpop.f32.mrf.mxu0
  %v2097 = vadd.f32 %v1812, %v2096
  %v2098 = vpop.f32.mrf.mxu0
  %v2099 = vpop.f32.mrf.mxu0
  %v2100 = vadd.f32 %v1812, %v2099
  %v2101 = vpop.f32.mrf.mxu0
  %2102 = vmatprep.mubr.bf16.mxu0 %v1712
  %2103 = vmatmul.mubr.bf16.gmra.mxu0 %v1711
  %v2104 = vpop.f32.mrf.mxu0
  %v2105 = vadd.f32 %v1812, %v2104
  %v2106 = vpop.f32.mrf.mxu0
  %v2107 = vpop.f32.mrf.mxu0
  %v2108 = vadd.f32 %v1812, %v2107
  %v2109 = vpop.f32.mrf.mxu0
  %2110 = vmatprep.mubr.bf16.mxu0 %v1716
  %2111 = vmatmul.mubr.bf16.gmra.mxu0 %v1715
  %v2112 = vpop.f32.mrf.mxu0
  %v2113 = vadd.f32 %v1812, %v2112
  %v2114 = vpop.f32.mrf.mxu0
  %v2115 = vpop.f32.mrf.mxu0
  %v2116 = vadd.f32 %v1812, %v2115
  %v2117 = vpop.f32.mrf.mxu0
  %2118 = vmatprep.mubr.bf16.mxu0 %v1720
  %2119 = vmatmul.mubr.bf16.gmra.mxu0 %v1719
  %v2120 = vpop.f32.mrf.mxu0
  %v2121 = vadd.f32 %v1812, %v2120
  %v2122 = vpop.f32.mrf.mxu0
  %v2123 = vpop.f32.mrf.mxu0
  %v2124 = vadd.f32 %v1812, %v2123
  %v2125 = vpop.f32.mrf.mxu0
  %2126 = vmatprep.mubr.bf16.mxu0 %v1724
  %2127 = vmatmul.mubr.bf16.gmra.mxu0 %v1723
  %v2128 = vpop.f32.mrf.mxu0
  %v2129 = vadd.f32 %v1812, %v2128
  %v2130 = vpop.f32.mrf.mxu0
  %v2131 = vpop.f32.mrf.mxu0
  %v2132 = vadd.f32 %v1812, %v2131
  %v2133 = vpop.f32.mrf.mxu0
  %2134 = vmatprep.mubr.bf16.mxu0 %v1728
  %2135 = vmatmul.mubr.bf16.gmra.mxu0 %v1727
  %v2136 = vpop.f32.mrf.mxu0
  %v2137 = vadd.f32 %v1812, %v2136
  %v2138 = vpop.f32.mrf.mxu0
  %v2139 = vpop.f32.mrf.mxu0
  %v2140 = vadd.f32 %v1812, %v2139
  %v2141 = vpop.f32.mrf.mxu0
  %2142 = vmatprep.mubr.bf16.mxu0 %v1732
  %2143 = vmatmul.mubr.bf16.gmra.mxu0 %v1731
  %v2144 = vpop.f32.mrf.mxu0
  %v2145 = vadd.f32 %v1812, %v2144
  %v2146 = vpop.f32.mrf.mxu0
  %v2147 = vpop.f32.mrf.mxu0
  %v2148 = vadd.f32 %v1812, %v2147
  %v2149 = vpop.f32.mrf.mxu0
  %2150 = vmatprep.mubr.bf16.mxu0 %v1736
  %2151 = vmatmul.mubr.bf16.gmra.mxu0 %v1735
  %v2152 = vpop.f32.mrf.mxu0
  %v2153 = vadd.f32 %v1812, %v2152
  %v2154 = vpop.f32.mrf.mxu0
  %v2155 = vpop.f32.mrf.mxu0
  %v2156 = vadd.f32 %v1812, %v2155
  %v2157 = vpop.f32.mrf.mxu0
  %2158 = vmatprep.mubr.bf16.mxu0 %v1740
  %2159 = vmatmul.mubr.bf16.gmra.mxu0 %v1739
  %v2160 = vpop.f32.mrf.mxu0
  %v2161 = vadd.f32 %v1812, %v2160
  %v2162 = vpop.f32.mrf.mxu0
  %v2163 = vpop.f32.mrf.mxu0
  %v2164 = vadd.f32 %v1812, %v2163
  %v2165 = vpop.f32.mrf.mxu0
  %2166 = vdwg.mxu0
  %2167 = vmatprep.subr.bf16.mxu0 0
  %2168 = vmatpush1.bf16.msra.mxu0 %v1965
  %2169 = vmatprep.subr.bf16.mxu0 0
  %2170 = vmatpush1.bf16.msra.mxu0 %v1964
  %2171 = vmatprep.subr.bf16.mxu0 0
  %2172 = vmatpush1.bf16.msra.mxu0 %v1963
  %2173 = vmatprep.subr.bf16.mxu0 0
  %2174 = vmatpush1.bf16.msra.mxu0 %v1962
  %2175 = vmatprep.subr.bf16.mxu0 0
  %2176 = vmatpush1.bf16.msra.mxu0 %v1961
  %2177 = vmatprep.subr.bf16.mxu0 0
  %2178 = vmatpush1.bf16.msra.mxu0 %v1960
  %2179 = vmatprep.subr.bf16.mxu0 0
  %2180 = vmatpush1.bf16.msra.mxu0 %v1959
  %2181 = vmatprep.subr.bf16.mxu0 0
  %2182 = vmatpush1.bf16.msra.mxu0 %v1958
  %2183 = vmatprep.subr.bf16.mxu0 0
  %2184 = vmatpush2.bf16.msra.mxu0 %v1973
  %2185 = vmatprep.subr.bf16.mxu0 0
  %2186 = vmatpush2.bf16.msra.mxu0 %v1972
  %2187 = vmatprep.subr.bf16.mxu0 0
  %2188 = vmatpush2.bf16.msra.mxu0 %v1971
  %2189 = vmatprep.subr.bf16.mxu0 0
  %2190 = vmatpush2.bf16.msra.mxu0 %v1970
  %2191 = vmatprep.subr.bf16.mxu0 0
  %2192 = vmatpush2.bf16.msra.mxu0 %v1969
  %2193 = vmatprep.subr.bf16.mxu0 0
  %2194 = vmatpush2.bf16.msra.mxu0 %v1968
  %2195 = vmatprep.subr.bf16.mxu0 0
  %2196 = vmatpush2.bf16.msra.mxu0 %v1967
  %2197 = vmatprep.subr.bf16.mxu0 0
  %2198 = vmatpush2.bf16.msra.mxu0 %v1966
  %2199 = vmatprep.mubr.bf16.mxu0 %v1682
  %2200 = vmatmul.mubr.bf16.gmra.mxu0 %v1681
  %v2201 = vpop.f32.mrf.mxu0
  %v2202 = vadd.f32 %v2041, %v2201
  %v2203 = vpop.f32.mrf.mxu0
  %v2204 = vpop.f32.mrf.mxu0
  %v2205 = vadd.f32 %v2044, %v2204
  %v2206 = vpop.f32.mrf.mxu0
  %2207 = vmatprep.mubr.bf16.mxu0 %v1686
  %2208 = vmatmul.mubr.bf16.gmra.mxu0 %v1685
  %v2209 = vpop.f32.mrf.mxu0
  %v2210 = vadd.f32 %v2049, %v2209
  %v2211 = vpop.f32.mrf.mxu0
  %v2212 = vpop.f32.mrf.mxu0
  %v2213 = vadd.f32 %v2052, %v2212
  %v2214 = vpop.f32.mrf.mxu0
  %2215 = vmatprep.mubr.bf16.mxu0 %v1690
  %2216 = vmatmul.mubr.bf16.gmra.mxu0 %v1689
  %v2217 = vpop.f32.mrf.mxu0
  %v2218 = vadd.f32 %v2057, %v2217
  %v2219 = vpop.f32.mrf.mxu0
  %v2220 = vpop.f32.mrf.mxu0
  %v2221 = vadd.f32 %v2060, %v2220
  %v2222 = vpop.f32.mrf.mxu0
  %2223 = vmatprep.mubr.bf16.mxu0 %v1694
  %2224 = vmatmul.mubr.bf16.gmra.mxu0 %v1693
  %v2225 = vpop.f32.mrf.mxu0
  %v2226 = vadd.f32 %v2065, %v2225
  %v2227 = vpop.f32.mrf.mxu0
  %v2228 = vpop.f32.mrf.mxu0
  %v2229 = vadd.f32 %v2068, %v2228
  %v2230 = vpop.f32.mrf.mxu0
  %2231 = vmatprep.mubr.bf16.mxu0 %v1698
  %2232 = vmatmul.mubr.bf16.gmra.mxu0 %v1697
  %v2233 = vpop.f32.mrf.mxu0
  %v2234 = vadd.f32 %v2073, %v2233
  %v2235 = vpop.f32.mrf.mxu0
  %v2236 = vpop.f32.mrf.mxu0
  %v2237 = vadd.f32 %v2076, %v2236
  %v2238 = vpop.f32.mrf.mxu0
  %2239 = vmatprep.mubr.bf16.mxu0 %v1702
  %2240 = vmatmul.mubr.bf16.gmra.mxu0 %v1701
  %v2241 = vpop.f32.mrf.mxu0
  %v2242 = vadd.f32 %v2081, %v2241
  %v2243 = vpop.f32.mrf.mxu0
  %v2244 = vpop.f32.mrf.mxu0
  %v2245 = vadd.f32 %v2084, %v2244
  %v2246 = vpop.f32.mrf.mxu0
  %2247 = vmatprep.mubr.bf16.mxu0 %v1706
  %2248 = vmatmul.mubr.bf16.gmra.mxu0 %v1705
  %v2249 = vpop.f32.mrf.mxu0
  %v2250 = vadd.f32 %v2089, %v2249
  %v2251 = vpop.f32.mrf.mxu0
  %v2252 = vpop.f32.mrf.mxu0
  %v2253 = vadd.f32 %v2092, %v2252
  %v2254 = vpop.f32.mrf.mxu0
  %2255 = vmatprep.mubr.bf16.mxu0 %v1710
  %2256 = vmatmul.mubr.bf16.gmra.mxu0 %v1709
  %v2257 = vpop.f32.mrf.mxu0
  %v2258 = vadd.f32 %v2097, %v2257
  %v2259 = vpop.f32.mrf.mxu0
  %v2260 = vpop.f32.mrf.mxu0
  %v2261 = vadd.f32 %v2100, %v2260
  %v2262 = vpop.f32.mrf.mxu0
  %2263 = vmatprep.mubr.bf16.mxu0 %v1714
  %2264 = vmatmul.mubr.bf16.gmra.mxu0 %v1713
  %v2265 = vpop.f32.mrf.mxu0
  %v2266 = vadd.f32 %v2105, %v2265
  %v2267 = vpop.f32.mrf.mxu0
  %v2268 = vpop.f32.mrf.mxu0
  %v2269 = vadd.f32 %v2108, %v2268
  %v2270 = vpop.f32.mrf.mxu0
  %2271 = vmatprep.mubr.bf16.mxu0 %v1718
  %2272 = vmatmul.mubr.bf16.gmra.mxu0 %v1717
  %v2273 = vpop.f32.mrf.mxu0
  %v2274 = vadd.f32 %v2113, %v2273
  %v2275 = vpop.f32.mrf.mxu0
  %v2276 = vpop.f32.mrf.mxu0
  %v2277 = vadd.f32 %v2116, %v2276
  %v2278 = vpop.f32.mrf.mxu0
  %2279 = vmatprep.mubr.bf16.mxu0 %v1722
  %2280 = vmatmul.mubr.bf16.gmra.mxu0 %v1721
  %v2281 = vpop.f32.mrf.mxu0
  %v2282 = vadd.f32 %v2121, %v2281
  %v2283 = vpop.f32.mrf.mxu0
  %v2284 = vpop.f32.mrf.mxu0
  %v2285 = vadd.f32 %v2124, %v2284
  %v2286 = vpop.f32.mrf.mxu0
  %2287 = vmatprep.mubr.bf16.mxu0 %v1726
  %2288 = vmatmul.mubr.bf16.gmra.mxu0 %v1725
  %v2289 = vpop.f32.mrf.mxu0
  %v2290 = vadd.f32 %v2129, %v2289
  %v2291 = vpop.f32.mrf.mxu0
  %v2292 = vpop.f32.mrf.mxu0
  %v2293 = vadd.f32 %v2132, %v2292
  %v2294 = vpop.f32.mrf.mxu0
  %2295 = vmatprep.mubr.bf16.mxu0 %v1730
  %2296 = vmatmul.mubr.bf16.gmra.mxu0 %v1729
  %v2297 = vpop.f32.mrf.mxu0
  %v2298 = vadd.f32 %v2137, %v2297
  %v2299 = vpop.f32.mrf.mxu0
  %v2300 = vpop.f32.mrf.mxu0
  %v2301 = vadd.f32 %v2140, %v2300
  %v2302 = vpop.f32.mrf.mxu0
  %2303 = vmatprep.mubr.bf16.mxu0 %v1734
  %2304 = vmatmul.mubr.bf16.gmra.mxu0 %v1733
  %v2305 = vpop.f32.mrf.mxu0
  %v2306 = vadd.f32 %v2145, %v2305
  %v2307 = vpop.f32.mrf.mxu0
  %v2308 = vpop.f32.mrf.mxu0
  %v2309 = vadd.f32 %v2148, %v2308
  %v2310 = vpop.f32.mrf.mxu0
  %2311 = vmatprep.mubr.bf16.mxu0 %v1738
  %2312 = vmatmul.mubr.bf16.gmra.mxu0 %v1737
  %v2313 = vpop.f32.mrf.mxu0
  %v2314 = vadd.f32 %v2153, %v2313
  %v2315 = vpop.f32.mrf.mxu0
  %v2316 = vpop.f32.mrf.mxu0
  %v2317 = vadd.f32 %v2156, %v2316
  %v2318 = vpop.f32.mrf.mxu0
  %2319 = vmatprep.mubr.bf16.mxu0 %v1742
  %2320 = vmatmul.mubr.bf16.gmra.mxu0 %v1741
  %v2321 = vpop.f32.mrf.mxu0
  %v2322 = vadd.f32 %v2161, %v2321
  %v2323 = vpop.f32.mrf.mxu0
  %v2324 = vpop.f32.mrf.mxu0
  %v2325 = vadd.f32 %v2164, %v2324
  %v2326 = vpop.f32.mrf.mxu0
  %2327 = vdwg.mxu0
  %2328 = vst [vmem:[%s9] sm:$0xff] %v2202
  %2329 = vst [vmem:[%s9 + $0x8] sm:$0xff] %v2205
  %2330 = vst [vmem:[%s9 + $0x10] sm:$0xff] %v2210
  %2331 = vst [vmem:[%s9 + $0x18] sm:$0xff] %v2213
  %2332 = vst [vmem:[%s9 + $0x20] sm:$0xff] %v2218
  %2333 = vst [vmem:[%s9 + $0x28] sm:$0xff] %v2221
  %2334 = vst [vmem:[%s9 + $0x30] sm:$0xff] %v2226
  %2335 = vst [vmem:[%s9 + $0x38] sm:$0xff] %v2229
  %2336 = vst [vmem:[%s9 + $0x40] sm:$0xff] %v2234
  %2337 = vst [vmem:[%s9 + $0x48] sm:$0xff] %v2237
  %2338 = vst [vmem:[%s9 + $0x50] sm:$0xff] %v2242
  %2339 = vst [vmem:[%s9 + $0x58] sm:$0xff] %v2245
  %2340 = vst [vmem:[%s9 + $0x60] sm:$0xff] %v2250
  %2341 = vst [vmem:[%s9 + $0x68] sm:$0xff] %v2253
  %2342 = vst [vmem:[%s9 + $0x70] sm:$0xff] %v2258
  %2343 = vst [vmem:[%s9 + $0x78] sm:$0xff] %v2261
  %2344 = vst [vmem:[%s9 + $0x80] sm:$0xff] %v2266
  %2345 = vst [vmem:[%s9 + $0x88] sm:$0xff] %v2269
  %2346 = vst [vmem:[%s9 + $0x90] sm:$0xff] %v2274
  %2347 = vst [vmem:[%s9 + $0x98] sm:$0xff] %v2277
  %2348 = vst [vmem:[%s9 + $0xa0] sm:$0xff] %v2282
  %2349 = vst [vmem:[%s9 + $0xa8] sm:$0xff] %v2285
  %2350 = vst [vmem:[%s9 + $0xb0] sm:$0xff] %v2290
  %2351 = vst [vmem:[%s9 + $0xb8] sm:$0xff] %v2293
  %2352 = vst [vmem:[%s9 + $0xc0] sm:$0xff] %v2298
  %2353 = vst [vmem:[%s9 + $0xc8] sm:$0xff] %v2301
  %2354 = vst [vmem:[%s9 + $0xd0] sm:$0xff] %v2306
  %2355 = vst [vmem:[%s9 + $0xd8] sm:$0xff] %v2309
  %2356 = vst [vmem:[%s9 + $0xe0] sm:$0xff] %v2314
  %2357 = vst [vmem:[%s9 + $0xe8] sm:$0xff] %v2317
  %2358 = vst [vmem:[%s9 + $0xf0] sm:$0xff] %v2322
  %2359 = vst [vmem:[%s9 + $0xf8] sm:$0xff] %v2325
  // Predicated region
  $region38: #{net_forward.1} parent=0 // pred_check
    _
  $region39: #{net_forward.1} parent=0 // pred_check_branch
    %2361 = sbr.rel (0) target = $region41
  $region40: #{net_forward.1} parent=0 // pred_region
    _
  $region41: #{net_forward.1} parent=0 // pred_fallthru
    _
  // Predicated region
  $region42: #{net_forward.1} parent=0 // pred_check
    _
  $region43: #{net_forward.1} parent=0 // pred_check_branch
    %2363 = sbr.rel (0) target = $region45
  $region44: #{net_forward.1} parent=0 // pred_region
    _
  $region45: #{net_forward.1} parent=0 // pred_fallthru
    _

</llo_original>
